<compile_context>
chip_gen: v6e
topology: v6e:2x2x1
jax: 0.10.0
libtpu: 0.0.40
codegen_flags: <defaults>
</compile_context>

<pallas_src>
import math

import jax
import jax.numpy as jnp
from jax.experimental import pallas as pl
from jax.experimental.pallas import tpu as pltpu

P_DROP = 0.622999021
KEEP_SCALE = 1.0 / (1.0 - P_DROP)
# keep iff signed_int32_bits >= threshold  <=>  keep with probability (1 - P_DROP)
_DROP_THRESHOLD_I32 = int(round(P_DROP * (1 << 32))) - (1 << 31)


def _attn_kernel(q_ref, k_ref, v_ref, mask_ref, bits_ref, o_ref):
    # q_ref/k_ref/v_ref/o_ref: (1, H, S, D); mask_ref/bits_ref: (1, H, S, S)
    d = q_ref.shape[-1]
    scale = 1.0 / math.sqrt(float(d))

    # Fold the 1/sqrt(d) scale into q (S*D elements) before the matmul, then cast
    # both MXU operands to bf16 (f32 accumulate via preferred_element_type).
    q = (q_ref[0] * scale).astype(jnp.bfloat16)   # (H, S, D)
    k = k_ref[0].astype(jnp.bfloat16)             # (H, S, D)
    v = v_ref[0].astype(jnp.bfloat16)             # (H, S, D)

    # scores = q @ k^T + mask   (batched over heads on the MXU)
    s = jnp.einsum("hqd,hkd->hqk", q, k, preferred_element_type=jnp.float32)
    s = s + mask_ref[0]

    # numerically-stable softmax over the last axis
    s = s - jnp.max(s, axis=-1, keepdims=True)
    p = jnp.exp(s)                                # (H, S, S), unnormalized
    l = jnp.sum(p, axis=-1, keepdims=True)        # (H, S, 1)

    # Fold the dropout keep-scale 1/(1-p) into the per-row normalization factor.
    inv = KEEP_SCALE / l                          # (H, S, 1) — only H*S divides

    # Dropout: keep with prob (1 - P_DROP) via a single int32 threshold compare.
    keep = bits_ref[0] >= jnp.int32(_DROP_THRESHOLD_I32)
    attn = jnp.where(keep, p * inv, 0.0).astype(jnp.bfloat16)

    out = jnp.einsum("hqk,hkd->hqd", attn, v, preferred_element_type=jnp.float32)
    o_ref[0] = out.astype(o_ref.dtype)


def attention_dropout(query, key, value, attn_mask, rng_key=None):
    """query/key/value: [B, H, S, D] f32; attn_mask broadcastable to [1, H, S, S]."""
    B, H, S, D = query.shape
    assert key.shape == (B, H, S, D) and value.shape == (B, H, S, D)
    assert attn_mask.shape[-2:] == (S, S)
    mask = jnp.broadcast_to(attn_mask.astype(jnp.float32), (1, H, S, S))

    # Host-side dropout randomness (statistically equivalent to torch.dropout's
    # Bernoulli(1-p) keep mask; not bit-identical to PyTorch's RNG).
    if rng_key is None:
        rng_key = jax.random.PRNGKey(0)
    bits_u32 = jax.random.bits(rng_key, (B, H, S, S), dtype=jnp.uint32)
    bits_i32 = jax.lax.bitcast_convert_type(bits_u32, jnp.int32)

    return pl.pallas_call(
        _attn_kernel,
        out_shape=jax.ShapeDtypeStruct((B, H, S, D), query.dtype),
        grid=(B,),
        in_specs=[
            pl.BlockSpec((1, H, S, D), lambda b: (b, 0, 0, 0)),  # query
            pl.BlockSpec((1, H, S, D), lambda b: (b, 0, 0, 0)),  # key
            pl.BlockSpec((1, H, S, D), lambda b: (b, 0, 0, 0)),  # value
            pl.BlockSpec((1, H, S, S), lambda b: (0, 0, 0, 0)),  # mask (resident, fetched once)
            pl.BlockSpec((1, H, S, S), lambda b: (b, 0, 0, 0)),  # dropout bits
        ],
        out_specs=pl.BlockSpec((1, H, S, D), lambda b: (b, 0, 0, 0)),
        compiler_params=pltpu.CompilerParams(
            dimension_semantics=("parallel",),
        ),
    )(query, key, value, mask, bits_i32)


if __name__ == "__main__":
    # Small shapes consistent with the module's forward (4-D q/k/v, broadcastable mask).
    B, H, S, D = 2, 4, 128, 64

    k0 = jax.random.PRNGKey(0)
    kq, kk, kv, km, kd = jax.random.split(k0, 5)
    query = jax.random.normal(kq, (B, H, S, D), dtype=jnp.float32)
    key = jax.random.normal(kk, (B, H, S, D), dtype=jnp.float32)
    value = jax.random.normal(kv, (B, H, S, D), dtype=jnp.float32)
    attn_mask = jax.random.normal(km, (1, H, S, S), dtype=jnp.float32)

    out = attention_dropout(query, key, value, attn_mask, rng_key=kd)
    jax.block_until_ready(out)
    assert out.shape == (B, H, S, D)
    assert bool(jnp.all(jnp.isfinite(out)))
    print("KERNEL_OK")
</pallas_src>

<mosaic_0001>
module attributes {stable_mosaic.version = 11 : i64} {
  func.func @_attn_kernel(%arg0: i32, %arg1: memref<1x4x128x64xf32, #tpu.memory_space<vmem>>, %arg2: memref<1x4x128x64xf32, #tpu.memory_space<vmem>>, %arg3: memref<1x4x128x64xf32, #tpu.memory_space<vmem>>, %arg4: memref<1x4x128x128xf32, #tpu.memory_space<vmem>>, %arg5: memref<1x4x128x128xi32, #tpu.memory_space<vmem>>, %arg6: memref<1x4x128x64xf32, #tpu.memory_space<vmem>>) attributes {dimension_semantics = [#tpu.dimension_semantics<parallel>], iteration_bounds = array<i64: 2>, scalar_prefetch = 0 : i64, scratch_operands = 0 : i64, tpu.core_type = #tpu.core_type<tc>, window_params = [{transform_indices = @transform_0, window_bounds = array<i64: 1, 4, 128, 64>}, {transform_indices = @transform_1, window_bounds = array<i64: 1, 4, 128, 64>}, {transform_indices = @transform_2, window_bounds = array<i64: 1, 4, 128, 64>}, {pipeline_mode = #tpu.pipeline_mode<synchronous>, transform_indices = @transform_3, window_bounds = array<i64: 1, 4, 128, 128>}, {transform_indices = @transform_4, window_bounds = array<i64: 1, 4, 128, 128>}, {transform_indices = @transform_5, window_bounds = array<i64: 1, 4, 128, 64>}]} {
    %c0 = arith.constant 0 : index
    %c0_0 = arith.constant 0 : index
    %c0_1 = arith.constant 0 : index
    %c0_2 = arith.constant 0 : index
    %0 = vector.load %arg1[%c0, %c0_0, %c0_1, %c0_2] : memref<1x4x128x64xf32, #tpu.memory_space<vmem>>, vector<1x4x128x64xf32>
    %1 = vector.shape_cast %0 : vector<1x4x128x64xf32> to vector<4x128x64xf32>
    %cst = arith.constant 1.250000e-01 : f32
    %2 = vector.broadcast %cst : f32 to vector<4x128x64xf32>
    %3 = arith.mulf %1, %2 : vector<4x128x64xf32>
    %4 = arith.truncf %3 : vector<4x128x64xf32> to vector<4x128x64xbf16>
    %c0_3 = arith.constant 0 : index
    %c0_4 = arith.constant 0 : index
    %c0_5 = arith.constant 0 : index
    %c0_6 = arith.constant 0 : index
    %5 = vector.load %arg2[%c0_3, %c0_4, %c0_5, %c0_6] : memref<1x4x128x64xf32, #tpu.memory_space<vmem>>, vector<1x4x128x64xf32>
    %6 = vector.shape_cast %5 : vector<1x4x128x64xf32> to vector<4x128x64xf32>
    %7 = arith.truncf %6 : vector<4x128x64xf32> to vector<4x128x64xbf16>
    %c0_7 = arith.constant 0 : index
    %c0_8 = arith.constant 0 : index
    %c0_9 = arith.constant 0 : index
    %c0_10 = arith.constant 0 : index
    %8 = vector.load %arg3[%c0_7, %c0_8, %c0_9, %c0_10] : memref<1x4x128x64xf32, #tpu.memory_space<vmem>>, vector<1x4x128x64xf32>
    %9 = vector.shape_cast %8 : vector<1x4x128x64xf32> to vector<4x128x64xf32>
    %10 = arith.truncf %9 : vector<4x128x64xf32> to vector<4x128x64xbf16>
    "tpu.trace_start"() <{level = 10 : i32, message = "hqd,hkd->hqk"}> : () -> ()
    %cst_11 = arith.constant dense<0.000000e+00> : vector<4x128x128xf32>
    %11 = tpu.matmul %4, %7, %cst_11 {dimension_numbers = #tpu.dot_dimension_numbers<[2], [2], [1], [1], [0, 0, 0, 1, 1, 1], [0], [0]>} : vector<4x128x64xbf16>, vector<4x128x64xbf16>, vector<4x128x128xf32> -> vector<4x128x128xf32>
    "tpu.trace_stop"() : () -> ()
    %c0_12 = arith.constant 0 : index
    %c0_13 = arith.constant 0 : index
    %c0_14 = arith.constant 0 : index
    %c0_15 = arith.constant 0 : index
    %12 = vector.load %arg4[%c0_12, %c0_13, %c0_14, %c0_15] : memref<1x4x128x128xf32, #tpu.memory_space<vmem>>, vector<1x4x128x128xf32>
    %13 = vector.shape_cast %12 : vector<1x4x128x128xf32> to vector<4x128x128xf32>
    %14 = arith.addf %11, %13 : vector<4x128x128xf32>
    %cst_16 = arith.constant dense<0xFF800000> : vector<4x128xf32>
    %15 = vector.multi_reduction <maximumf>, %14, %cst_16 [2] : vector<4x128x128xf32> to vector<4x128xf32>
    %16 = vector.shape_cast %15 : vector<4x128xf32> to vector<4x128x1xf32>
    %17 = vector.broadcast %16 : vector<4x128x1xf32> to vector<4x128x128xf32>
    %18 = arith.subf %14, %17 : vector<4x128x128xf32>
    %19 = math.exp %18 : vector<4x128x128xf32>
    %cst_17 = arith.constant dense<0.000000e+00> : vector<4x128xf32>
    %20 = vector.multi_reduction <add>, %19, %cst_17 [2] : vector<4x128x128xf32> to vector<4x128xf32>
    %21 = vector.shape_cast %20 : vector<4x128xf32> to vector<4x128x1xf32>
    %cst_18 = arith.constant 2.65251303 : f32
    %22 = vector.broadcast %cst_18 : f32 to vector<4x128x1xf32>
    %23 = arith.divf %22, %21 : vector<4x128x1xf32>
    %c0_19 = arith.constant 0 : index
    %c0_20 = arith.constant 0 : index
    %c0_21 = arith.constant 0 : index
    %c0_22 = arith.constant 0 : index
    %24 = vector.load %arg5[%c0_19, %c0_20, %c0_21, %c0_22] : memref<1x4x128x128xi32, #tpu.memory_space<vmem>>, vector<1x4x128x128xi32>
    %25 = vector.shape_cast %24 : vector<1x4x128x128xi32> to vector<4x128x128xi32>
    %c528276773_i32 = arith.constant 528276773 : i32
    %26 = vector.broadcast %c528276773_i32 : i32 to vector<4x128x128xi32>
    %27 = arith.cmpi sge, %25, %26 : vector<4x128x128xi32>
    %28 = vector.broadcast %23 : vector<4x128x1xf32> to vector<4x128x128xf32>
    %29 = arith.mulf %19, %28 : vector<4x128x128xf32>
    %cst_23 = arith.constant 0.000000e+00 : f32
    %30 = vector.broadcast %cst_23 : f32 to vector<4x128x128xf32>
    %31 = arith.select %27, %29, %30 : vector<4x128x128xi1>, vector<4x128x128xf32>
    %32 = arith.truncf %31 : vector<4x128x128xf32> to vector<4x128x128xbf16>
    "tpu.trace_start"() <{level = 10 : i32, message = "hqk,hkd->hqd"}> : () -> ()
    %cst_24 = arith.constant dense<0.000000e+00> : vector<4x128x64xf32>
    %33 = tpu.matmul %32, %10, %cst_24 {dimension_numbers = #tpu.dot_dimension_numbers<[2], [1], [1], [2], [0, 0, 0, 1, 1, 2], [0], [0]>} : vector<4x128x128xbf16>, vector<4x128x64xbf16>, vector<4x128x64xf32> -> vector<4x128x64xf32>
    "tpu.trace_stop"() : () -> ()
    %c0_25 = arith.constant 0 : index
    %c0_26 = arith.constant 0 : index
    %c0_27 = arith.constant 0 : index
    %c0_28 = arith.constant 0 : index
    %34 = vector.load %arg6[%c0_25, %c0_26, %c0_27, %c0_28] : memref<1x4x128x64xf32, #tpu.memory_space<vmem>>, vector<1x4x128x64xf32>
    %35 = vector.shape_cast %34 : vector<1x4x128x64xf32> to vector<4x128x64xf32>
    %36 = vector.shape_cast %33 : vector<4x128x64xf32> to vector<1x4x128x64xf32>
    tpu.vector_store %arg6[%c0_25, %c0_26, %c0_27, %c0_28], %36 {strides = array<i32>} : memref<1x4x128x64xf32, #tpu.memory_space<vmem>>, vector<1x4x128x64xf32>,
    return
  }
  func.func @transform_0(%arg0: i32) -> (i32, i32, i32, i32) {
    %c0_i32 = arith.constant 0 : i32
    %c0_i32_0 = arith.constant 0 : i32
    %c0_i32_1 = arith.constant 0 : i32
    %c0_i32_2 = arith.constant 0 : i32
    return %arg0, %c0_i32, %c0_i32_0, %c0_i32_1 : i32, i32, i32, i32
  }
  func.func @transform_1(%arg0: i32) -> (i32, i32, i32, i32) {
    %c0_i32 = arith.constant 0 : i32
    %c0_i32_0 = arith.constant 0 : i32
    %c0_i32_1 = arith.constant 0 : i32
    %c0_i32_2 = arith.constant 0 : i32
    return %arg0, %c0_i32, %c0_i32_0, %c0_i32_1 : i32, i32, i32, i32
  }
  func.func @transform_2(%arg0: i32) -> (i32, i32, i32, i32) {
    %c0_i32 = arith.constant 0 : i32
    %c0_i32_0 = arith.constant 0 : i32
    %c0_i32_1 = arith.constant 0 : i32
    %c0_i32_2 = arith.constant 0 : i32
    return %arg0, %c0_i32, %c0_i32_0, %c0_i32_1 : i32, i32, i32, i32
  }
  func.func @transform_3(%arg0: i32) -> (i32, i32, i32, i32) {
    %c0_i32 = arith.constant 0 : i32
    %c0_i32_0 = arith.constant 0 : i32
    %c0_i32_1 = arith.constant 0 : i32
    %c0_i32_2 = arith.constant 0 : i32
    %c0_i32_3 = arith.constant 0 : i32
    return %c0_i32, %c0_i32_0, %c0_i32_1, %c0_i32_2 : i32, i32, i32, i32
  }
  func.func @transform_4(%arg0: i32) -> (i32, i32, i32, i32) {
    %c0_i32 = arith.constant 0 : i32
    %c0_i32_0 = arith.constant 0 : i32
    %c0_i32_1 = arith.constant 0 : i32
    %c0_i32_2 = arith.constant 0 : i32
    return %arg0, %c0_i32, %c0_i32_0, %c0_i32_1 : i32, i32, i32, i32
  }
  func.func @transform_5(%arg0: i32) -> (i32, i32, i32, i32) {
    %c0_i32 = arith.constant 0 : i32
    %c0_i32_0 = arith.constant 0 : i32
    %c0_i32_1 = arith.constant 0 : i32
    %c0_i32_2 = arith.constant 0 : i32
    return %arg0, %c0_i32, %c0_i32_0, %c0_i32_1 : i32, i32, i32, i32
  }
}

</mosaic_0001>

<llo_original>
// kernel: tpu_custom_call.1
$region0: #{tpu_custom_call.1}
  #allocation0 [shape = 'u32[]', space=smem, size = 0x4, offset = 0x4, fixed_abs, tag = 'smem constant byte address 0x4 - core index']
  #allocation1 [shape = 'u32[144,128]{1,0:T(1,128)}', space=vmem, size = 0x12000, scoped, tag = 'internal scratch']
  %s0 = inlined_call_operand.vmem [shape: f32[2,4,128,64], index: 0, kind: input, shape index: {}]
  %s1 = inlined_call_operand.vmem [shape: f32[2,4,128,64], index: 1, kind: input, shape index: {}]
  %s2 = inlined_call_operand.vmem [shape: f32[2,4,128,64], index: 2, kind: input, shape index: {}]
  %s3 = inlined_call_operand.vmem [shape: f32[1,4,128,128], index: 3, kind: input, shape index: {}]
  %s4 = inlined_call_operand.vmem [shape: s32[2,4,128,128], index: 4, kind: input, shape index: {}]
  %s5 = inlined_call_operand.vmem [shape: f32[2,4,128,64], index: 5, kind: output, shape index: {}]
  %s6 = sld [smem:[#allocation0]]
  $region53: #{tpu_custom_call.1} parent=0
    _
  %s8 = ssub.s32 1, %s6
  %s9 = scalar_select 0, %s8, %s6
  loop: start=0, step=1, limit=4
  $region2: #{tpu_custom_call.1} parent=0 // loop_pre_header
    _
  $region3: #{tpu_custom_call.1} parent=0 // loop_header
    %s11 = sphi 0, %s15
    %p12 = scmp.ge.s32.totalorder %s11, 4
    %s21 = sphi 0, %s23
    %s24 = sphi 0, %s21
    %s25 = sphi 0, %s24
    %s41 = sphi 0, %s25
    %s47 = sphi 0, %s49
    %s50 = sphi 0, %s47
    %s51 = sphi 0, %s50
    %s67 = sphi 0, %s51
    %s73 = sphi 0, %s75
    %s76 = sphi 0, %s73
    %s77 = sphi 0, %s76
    %s93 = sphi 0, %s77
    %s97 = sphi 0, %s97
    %s99 = sphi 0, %s97
    %s100 = sphi 0, %s99
    %s114 = sphi 0, %s100
    %s120 = sphi 0, %s122
    %s123 = sphi 0, %s120
    %s124 = sphi 0, %s123
    %s140 = sphi 0, %s124
    %s146 = sphi 0, %s148
    %s149 = sphi 0, %s146
    %s150 = sphi 0, %s149
    %s166 = sphi 0, %s150
  $region4: #{tpu_custom_call.1} parent=0 // loop_header_branch
    %14 = sbr.rel (%p12) target = $region8
  $region5: #{tpu_custom_call.1} parent=0 // loop_body
    %s16 = ssub.s32 %s11, 1
    %s17 = ssub.s32 %s11, 2
    %s18 = sadd.s32 %s11, 1
    %s19 = ssub.s32 %s11, %s18
    %p20 = scmp.eq.s32.totalorder %s19, 0
    %s22 = sadd.s32 %s21, 1
    %s23 = scalar_select %p20, %s21, %s22
    %p26 = pneg %p20
    %p27 = scmp.eq.s32.totalorder %s11, 1
    %p28 = por %p26, %p27
    %p29 = scmp.ne.s32.totalorder %s21, %s24
    %p30 = scmp.eq.s32.totalorder %s11, 0
    %p31 = por %p29, %p30
    %p32 = scmp.ne.s32.totalorder %s21, %s24
    %p33 = scmp.eq.s32.totalorder %s16, 1
    %p34 = por %p32, %p33
    %p35 = scmp.ne.s32.totalorder %s24, %s25
    %p36 = scmp.eq.s32.totalorder %s16, 0
    %p37 = por %p35, %p36
    %p38 = scmp.ne.s32.totalorder %s24, %s25
    %p39 = scmp.eq.s32.totalorder %s17, 1
    %p40 = por %p38, %p39
    %p42 = scmp.ne.s32.totalorder %s25, %s41
    %p43 = scmp.eq.s32.totalorder %s17, 0
    %p44 = por %p42, %p43
    %s45 = ssub.s32 %s11, %s18
    %p46 = scmp.eq.s32.totalorder %s45, 0
    %s48 = sadd.s32 %s47, 1
    %s49 = scalar_select %p46, %s47, %s48
    %p52 = pneg %p46
    %p53 = scmp.eq.s32.totalorder %s11, 1
    %p54 = por %p52, %p53
    %p55 = scmp.ne.s32.totalorder %s47, %s50
    %p56 = scmp.eq.s32.totalorder %s11, 0
    %p57 = por %p55, %p56
    %p58 = scmp.ne.s32.totalorder %s47, %s50
    %p59 = scmp.eq.s32.totalorder %s16, 1
    %p60 = por %p58, %p59
    %p61 = scmp.ne.s32.totalorder %s50, %s51
    %p62 = scmp.eq.s32.totalorder %s16, 0
    %p63 = por %p61, %p62
    %p64 = scmp.ne.s32.totalorder %s50, %s51
    %p65 = scmp.eq.s32.totalorder %s17, 1
    %p66 = por %p64, %p65
    %p68 = scmp.ne.s32.totalorder %s51, %s67
    %p69 = scmp.eq.s32.totalorder %s17, 0
    %p70 = por %p68, %p69
    %s71 = ssub.s32 %s11, %s18
    %p72 = scmp.eq.s32.totalorder %s71, 0
    %s74 = sadd.s32 %s73, 1
    %s75 = scalar_select %p72, %s73, %s74
    %p78 = pneg %p72
    %p79 = scmp.eq.s32.totalorder %s11, 1
    %p80 = por %p78, %p79
    %p81 = scmp.ne.s32.totalorder %s73, %s76
    %p82 = scmp.eq.s32.totalorder %s11, 0
    %p83 = por %p81, %p82
    %p84 = scmp.ne.s32.totalorder %s73, %s76
    %p85 = scmp.eq.s32.totalorder %s16, 1
    %p86 = por %p84, %p85
    %p87 = scmp.ne.s32.totalorder %s76, %s77
    %p88 = scmp.eq.s32.totalorder %s16, 0
    %p89 = por %p87, %p88
    %p90 = scmp.ne.s32.totalorder %s76, %s77
    %p91 = scmp.eq.s32.totalorder %s17, 1
    %p92 = por %p90, %p91
    %p94 = scmp.ne.s32.totalorder %s77, %s93
    %p95 = scmp.eq.s32.totalorder %s17, 0
    %p96 = por %p94, %p95
    %s98 = sadd.s32 %s97, 1
    %p101 = scmp.eq.s32.totalorder %s11, 1
    %p102 = scmp.ne.s32.totalorder %s97, %s99
    %p103 = scmp.eq.s32.totalorder %s11, 0
    %p104 = por %p102, %p103
    %p105 = scmp.ne.s32.totalorder %s97, %s99
    %p106 = scmp.eq.s32.totalorder %s16, 1
    %p107 = por %p105, %p106
    %p108 = scmp.ne.s32.totalorder %s99, %s100
    %p109 = scmp.eq.s32.totalorder %s16, 0
    %p110 = por %p108, %p109
    %p111 = scmp.ne.s32.totalorder %s99, %s100
    %p112 = scmp.eq.s32.totalorder %s17, 1
    %p113 = por %p111, %p112
    %p115 = scmp.ne.s32.totalorder %s100, %s114
    %p116 = scmp.eq.s32.totalorder %s17, 0
    %p117 = por %p115, %p116
    %s118 = ssub.s32 %s11, %s18
    %p119 = scmp.eq.s32.totalorder %s118, 0
    %s121 = sadd.s32 %s120, 1
    %s122 = scalar_select %p119, %s120, %s121
    %p125 = pneg %p119
    %p126 = scmp.eq.s32.totalorder %s11, 1
    %p127 = por %p125, %p126
    %p128 = scmp.ne.s32.totalorder %s120, %s123
    %p129 = scmp.eq.s32.totalorder %s11, 0
    %p130 = por %p128, %p129
    %p131 = scmp.ne.s32.totalorder %s120, %s123
    %p132 = scmp.eq.s32.totalorder %s16, 1
    %p133 = por %p131, %p132
    %p134 = scmp.ne.s32.totalorder %s123, %s124
    %p135 = scmp.eq.s32.totalorder %s16, 0
    %p136 = por %p134, %p135
    %p137 = scmp.ne.s32.totalorder %s123, %s124
    %p138 = scmp.eq.s32.totalorder %s17, 1
    %p139 = por %p137, %p138
    %p141 = scmp.ne.s32.totalorder %s124, %s140
    %p142 = scmp.eq.s32.totalorder %s17, 0
    %p143 = por %p141, %p142
    %s144 = ssub.s32 %s11, %s18
    %p145 = scmp.eq.s32.totalorder %s144, 0
    %s147 = sadd.s32 %s146, 1
    %s148 = scalar_select %p145, %s146, %s147
    %p151 = pneg %p145
    %p152 = scmp.eq.s32.totalorder %s11, 1
    %p153 = por %p151, %p152
    %p154 = scmp.ne.s32.totalorder %s146, %s149
    %p155 = scmp.eq.s32.totalorder %s11, 0
    %p156 = por %p154, %p155
    %p157 = scmp.ne.s32.totalorder %s146, %s149
    %p158 = scmp.eq.s32.totalorder %s16, 1
    %p159 = por %p157, %p158
    %p160 = scmp.ne.s32.totalorder %s149, %s150
    %p161 = scmp.eq.s32.totalorder %s16, 0
    %p162 = por %p160, %p161
    %p163 = scmp.ne.s32.totalorder %s149, %s150
    %p164 = scmp.eq.s32.totalorder %s17, 1
    %p165 = por %p163, %p164
    %p167 = scmp.ne.s32.totalorder %s150, %s166
    %p168 = scmp.eq.s32.totalorder %s17, 0
    %p169 = por %p167, %p168
    %p170 = scmp.le.s32.totalorder 1, %s11
    %p171 = scmp.lt.s32.totalorder %s11, 3
    %p172 = pnand %p170, %p171
    %p173 = pneg %p172
    // Predicated region
    $region9: #{tpu_custom_call.1} parent=5 // pred_check
      _
    $region10: #{tpu_custom_call.1} parent=5 // pred_check_branch
      %175 = sbr.rel (%p172) target = $region12
    $region11: #{tpu_custom_call.1} parent=5 // pred_region
      %s176 = ssub.s32 %s11, 1
      // Predicated region
      $region13: #{tpu_custom_call.1} parent=11 // pred_check
        %p177 = pneg %p110
      $region14: #{tpu_custom_call.1} parent=11 // pred_check_branch
        %179 = sbr.rel (%p177) target = $region16
      $region15: #{tpu_custom_call.1} parent=11 // pred_region
        _
      $region16: #{tpu_custom_call.1} parent=11 // pred_fallthru
        _
    $region12: #{tpu_custom_call.1} parent=5 // pred_fallthru
      _
    %p180 = scmp.lt.s32.totalorder %s11, 2
    // Predicated region
    $region17: #{tpu_custom_call.1} parent=5 // pred_check
      %p181 = pneg %p180
    $region18: #{tpu_custom_call.1} parent=5 // pred_check_branch
      %183 = sbr.rel (%p181) target = $region20
    $region19: #{tpu_custom_call.1} parent=5 // pred_region
      // Predicated region
      $region21: #{tpu_custom_call.1} parent=19 // pred_check
        %p184 = pneg %p31
      $region22: #{tpu_custom_call.1} parent=19 // pred_check_branch
        %186 = sbr.rel (%p184) target = $region24
      $region23: #{tpu_custom_call.1} parent=19 // pred_region
        %p187 = scmp.lt.s32.totalorder %s11, 1
        %s188 = scalar_select %p187, %s11, 1
        %s189 = smul.addr %s188, 64
        %s190 = smul.addr %s189, 8
        %s191 = scalar_lea.vmem %s0, %s190
      $region24: #{tpu_custom_call.1} parent=19 // pred_fallthru
        _
      // Predicated region
      $region25: #{tpu_custom_call.1} parent=19 // pred_check
        %p192 = pneg %p57
      $region26: #{tpu_custom_call.1} parent=19 // pred_check_branch
        %194 = sbr.rel (%p192) target = $region28
      $region27: #{tpu_custom_call.1} parent=19 // pred_region
        %p195 = scmp.lt.s32.totalorder %s11, 1
        %s196 = scalar_select %p195, %s11, 1
        %s197 = smul.addr %s196, 64
        %s198 = smul.addr %s197, 8
        %s199 = scalar_lea.vmem %s1, %s198
      $region28: #{tpu_custom_call.1} parent=19 // pred_fallthru
        _
      // Predicated region
      $region29: #{tpu_custom_call.1} parent=19 // pred_check
        %p200 = pneg %p83
      $region30: #{tpu_custom_call.1} parent=19 // pred_check_branch
        %202 = sbr.rel (%p200) target = $region32
      $region31: #{tpu_custom_call.1} parent=19 // pred_region
        %p203 = scmp.lt.s32.totalorder %s11, 1
        %s204 = scalar_select %p203, %s11, 1
        %s205 = smul.addr %s204, 64
        %s206 = smul.addr %s205, 8
        %s207 = scalar_lea.vmem %s2, %s206
      $region32: #{tpu_custom_call.1} parent=19 // pred_fallthru
        _
      // Predicated region
      $region33: #{tpu_custom_call.1} parent=19 // pred_check
        %p208 = pneg %p130
      $region34: #{tpu_custom_call.1} parent=19 // pred_check_branch
        %210 = sbr.rel (%p208) target = $region36
      $region35: #{tpu_custom_call.1} parent=19 // pred_region
        %p211 = scmp.lt.s32.totalorder %s11, 1
        %s212 = scalar_select %p211, %s11, 1
        %s213 = smul.addr %s212, 64
        %s214 = smul.addr %s213, 8
        %s215 = scalar_lea.vmem %s4, %s214
      $region36: #{tpu_custom_call.1} parent=19 // pred_fallthru
        _
    $region20: #{tpu_custom_call.1} parent=5 // pred_fallthru
      _
    %p216 = scmp.le.s32.totalorder 1, %s11
    %p217 = scmp.lt.s32.totalorder %s11, 3
    %p218 = pnand %p216, %p217
    %p219 = pneg %p218
    // Predicated region
    $region37: #{tpu_custom_call.1} parent=5 // pred_check
      _
    $region38: #{tpu_custom_call.1} parent=5 // pred_check_branch
      %221 = sbr.rel (%p218) target = $region40
    $region39: #{tpu_custom_call.1} parent=5 // pred_region
      %s222 = ssub.s32 %s11, 1
      %p223 = scmp.lt.s32.totalorder %s16, 1
      %s224 = scalar_select %p223, %s16, 1
      %s225 = smul.addr %s224, 64
      %s226 = smul.addr %s225, 8
      %s227 = scalar_lea.vmem %s0, %s226
      %p228 = pneg %p37
      %p229 = pneg %p34
      %p230 = scmp.lt.s32.totalorder %s16, 1
      %s231 = scalar_select %p230, %s16, 1
      %s232 = smul.addr %s231, 64
      %s233 = smul.addr %s232, 8
      %s234 = scalar_lea.vmem %s1, %s233
      %p235 = pneg %p63
      %p236 = pneg %p60
      %p237 = scmp.lt.s32.totalorder %s16, 1
      %s238 = scalar_select %p237, %s16, 1
      %s239 = smul.addr %s238, 64
      %s240 = smul.addr %s239, 8
      %s241 = scalar_lea.vmem %s2, %s240
      %p242 = pneg %p89
      %p243 = pneg %p86
      %p244 = pneg %p110
      %p245 = pneg %p107
      %p246 = scmp.lt.s32.totalorder %s16, 1
      %s247 = scalar_select %p246, %s16, 1
      %s248 = smul.addr %s247, 64
      %s249 = smul.addr %s248, 8
      %s250 = scalar_lea.vmem %s4, %s249
      %p251 = pneg %p136
      %p252 = pneg %p133
      %p253 = pneg %p162
      %p254 = pneg %p159
      %p255 = scmp.lt.s32.totalorder %s16, 1
      %s256 = scalar_select %p255, %s16, 1
      %s257 = smul.addr %s256, 64
      %s258 = smul.addr %s257, 8
      %s259 = scalar_lea.vmem %s5, %s258
      %p260 = scmp.lt.s32.totalorder %s16, 1
      %s261 = scalar_select %p260, %s16, 1
      %s262 = smul.addr %s261, 64
      %s263 = smul.addr %s262, 8
      %s264 = scalar_lea.vmem %s0, %s263
      %p265 = scmp.lt.s32.totalorder %s16, 1
      %s266 = scalar_select %p265, %s16, 1
      %s267 = smul.addr %s266, 64
      %s268 = smul.addr %s267, 8
      %s269 = scalar_lea.vmem %s1, %s268
      %p270 = scmp.lt.s32.totalorder %s16, 1
      %s271 = scalar_select %p270, %s16, 1
      %s272 = smul.addr %s271, 64
      %s273 = smul.addr %s272, 8
      %s274 = scalar_lea.vmem %s2, %s273
      %p275 = scmp.lt.s32.totalorder %s16, 1
      %s276 = scalar_select %p275, %s16, 1
      %s277 = smul.addr %s276, 64
      %s278 = smul.addr %s277, 8
      %s279 = scalar_lea.vmem %s4, %s278
      %p280 = scmp.lt.s32.totalorder %s16, 1
      %s281 = scalar_select %p280, %s16, 1
      %s282 = smul.addr %s281, 64
      %s283 = smul.addr %s282, 8
      %s284 = scalar_lea.vmem %s5, %s283
      %v286 = vld [vmem:[%s264] sm:$0xff]
      %v287 = vld [vmem:[%s264 + $0x8] sm:$0xff]
      %v288 = vld [vmem:[%s264 + $0x10] sm:$0xff]
      %v289 = vld [vmem:[%s264 + $0x18] sm:$0xff]
      %v290 = vld [vmem:[%s264 + $0x20] sm:$0xff]
      %v291 = vld [vmem:[%s264 + $0x28] sm:$0xff]
      %v292 = vld [vmem:[%s264 + $0x30] sm:$0xff]
      %v293 = vld [vmem:[%s264 + $0x38] sm:$0xff]
      %v294 = vld [vmem:[%s264 + $0x40] sm:$0xff]
      %v295 = vld [vmem:[%s264 + $0x48] sm:$0xff]
      %v296 = vld [vmem:[%s264 + $0x50] sm:$0xff]
      %v297 = vld [vmem:[%s264 + $0x58] sm:$0xff]
      %v298 = vld [vmem:[%s264 + $0x60] sm:$0xff]
      %v299 = vld [vmem:[%s264 + $0x68] sm:$0xff]
      %v300 = vld [vmem:[%s264 + $0x70] sm:$0xff]
      %v301 = vld [vmem:[%s264 + $0x78] sm:$0xff]
      %v302 = vld [vmem:[%s264 + $0x80] sm:$0xff]
      %v303 = vld [vmem:[%s264 + $0x88] sm:$0xff]
      %v304 = vld [vmem:[%s264 + $0x90] sm:$0xff]
      %v305 = vld [vmem:[%s264 + $0x98] sm:$0xff]
      %v306 = vld [vmem:[%s264 + $0xa0] sm:$0xff]
      %v307 = vld [vmem:[%s264 + $0xa8] sm:$0xff]
      %v308 = vld [vmem:[%s264 + $0xb0] sm:$0xff]
      %v309 = vld [vmem:[%s264 + $0xb8] sm:$0xff]
      %v310 = vld [vmem:[%s264 + $0xc0] sm:$0xff]
      %v311 = vld [vmem:[%s264 + $0xc8] sm:$0xff]
      %v312 = vld [vmem:[%s264 + $0xd0] sm:$0xff]
      %v313 = vld [vmem:[%s264 + $0xd8] sm:$0xff]
      %v314 = vld [vmem:[%s264 + $0xe0] sm:$0xff]
      %v315 = vld [vmem:[%s264 + $0xe8] sm:$0xff]
      %v316 = vld [vmem:[%s264 + $0xf0] sm:$0xff]
      %v317 = vld [vmem:[%s264 + $0xf8] sm:$0xff]
      %v318 = vld [vmem:[%s264 + $0x100] sm:$0xff]
      %v319 = vld [vmem:[%s264 + $0x108] sm:$0xff]
      %v320 = vld [vmem:[%s264 + $0x110] sm:$0xff]
      %v321 = vld [vmem:[%s264 + $0x118] sm:$0xff]
      %v322 = vld [vmem:[%s264 + $0x120] sm:$0xff]
      %v323 = vld [vmem:[%s264 + $0x128] sm:$0xff]
      %v324 = vld [vmem:[%s264 + $0x130] sm:$0xff]
      %v325 = vld [vmem:[%s264 + $0x138] sm:$0xff]
      %v326 = vld [vmem:[%s264 + $0x140] sm:$0xff]
      %v327 = vld [vmem:[%s264 + $0x148] sm:$0xff]
      %v328 = vld [vmem:[%s264 + $0x150] sm:$0xff]
      %v329 = vld [vmem:[%s264 + $0x158] sm:$0xff]
      %v330 = vld [vmem:[%s264 + $0x160] sm:$0xff]
      %v331 = vld [vmem:[%s264 + $0x168] sm:$0xff]
      %v332 = vld [vmem:[%s264 + $0x170] sm:$0xff]
      %v333 = vld [vmem:[%s264 + $0x178] sm:$0xff]
      %v334 = vld [vmem:[%s264 + $0x180] sm:$0xff]
      %v335 = vld [vmem:[%s264 + $0x188] sm:$0xff]
      %v336 = vld [vmem:[%s264 + $0x190] sm:$0xff]
      %v337 = vld [vmem:[%s264 + $0x198] sm:$0xff]
      %v338 = vld [vmem:[%s264 + $0x1a0] sm:$0xff]
      %v339 = vld [vmem:[%s264 + $0x1a8] sm:$0xff]
      %v340 = vld [vmem:[%s264 + $0x1b0] sm:$0xff]
      %v341 = vld [vmem:[%s264 + $0x1b8] sm:$0xff]
      %v342 = vld [vmem:[%s264 + $0x1c0] sm:$0xff]
      %v343 = vld [vmem:[%s264 + $0x1c8] sm:$0xff]
      %v344 = vld [vmem:[%s264 + $0x1d0] sm:$0xff]
      %v345 = vld [vmem:[%s264 + $0x1d8] sm:$0xff]
      %v346 = vld [vmem:[%s264 + $0x1e0] sm:$0xff]
      %v347 = vld [vmem:[%s264 + $0x1e8] sm:$0xff]
      %v348 = vld [vmem:[%s264 + $0x1f0] sm:$0xff]
      %v349 = vld [vmem:[%s264 + $0x1f8] sm:$0xff]
      %v350 = vmul.f32 %v286, 0.125
      %v351 = vmul.f32 %v287, 0.125
      %v352 = vmul.f32 %v288, 0.125
      %v353 = vmul.f32 %v289, 0.125
      %v354 = vmul.f32 %v290, 0.125
      %v355 = vmul.f32 %v291, 0.125
      %v356 = vmul.f32 %v292, 0.125
      %v357 = vmul.f32 %v293, 0.125
      %v358 = vmul.f32 %v294, 0.125
      %v359 = vmul.f32 %v295, 0.125
      %v360 = vmul.f32 %v296, 0.125
      %v361 = vmul.f32 %v297, 0.125
      %v362 = vmul.f32 %v298, 0.125
      %v363 = vmul.f32 %v299, 0.125
      %v364 = vmul.f32 %v300, 0.125
      %v365 = vmul.f32 %v301, 0.125
      %v366 = vmul.f32 %v302, 0.125
      %v367 = vmul.f32 %v303, 0.125
      %v368 = vmul.f32 %v304, 0.125
      %v369 = vmul.f32 %v305, 0.125
      %v370 = vmul.f32 %v306, 0.125
      %v371 = vmul.f32 %v307, 0.125
      %v372 = vmul.f32 %v308, 0.125
      %v373 = vmul.f32 %v309, 0.125
      %v374 = vmul.f32 %v310, 0.125
      %v375 = vmul.f32 %v311, 0.125
      %v376 = vmul.f32 %v312, 0.125
      %v377 = vmul.f32 %v313, 0.125
      %v378 = vmul.f32 %v314, 0.125
      %v379 = vmul.f32 %v315, 0.125
      %v380 = vmul.f32 %v316, 0.125
      %v381 = vmul.f32 %v317, 0.125
      %v382 = vmul.f32 %v318, 0.125
      %v383 = vmul.f32 %v319, 0.125
      %v384 = vmul.f32 %v320, 0.125
      %v385 = vmul.f32 %v321, 0.125
      %v386 = vmul.f32 %v322, 0.125
      %v387 = vmul.f32 %v323, 0.125
      %v388 = vmul.f32 %v324, 0.125
      %v389 = vmul.f32 %v325, 0.125
      %v390 = vmul.f32 %v326, 0.125
      %v391 = vmul.f32 %v327, 0.125
      %v392 = vmul.f32 %v328, 0.125
      %v393 = vmul.f32 %v329, 0.125
      %v394 = vmul.f32 %v330, 0.125
      %v395 = vmul.f32 %v331, 0.125
      %v396 = vmul.f32 %v332, 0.125
      %v397 = vmul.f32 %v333, 0.125
      %v398 = vmul.f32 %v334, 0.125
      %v399 = vmul.f32 %v335, 0.125
      %v400 = vmul.f32 %v336, 0.125
      %v401 = vmul.f32 %v337, 0.125
      %v402 = vmul.f32 %v338, 0.125
      %v403 = vmul.f32 %v339, 0.125
      %v404 = vmul.f32 %v340, 0.125
      %v405 = vmul.f32 %v341, 0.125
      %v406 = vmul.f32 %v342, 0.125
      %v407 = vmul.f32 %v343, 0.125
      %v408 = vmul.f32 %v344, 0.125
      %v409 = vmul.f32 %v345, 0.125
      %v410 = vmul.f32 %v346, 0.125
      %v411 = vmul.f32 %v347, 0.125
      %v412 = vmul.f32 %v348, 0.125
      %v413 = vmul.f32 %v349, 0.125
      %v414 = vpack.c.bf16 %v351, %v350
      %v415 = vpack.c.bf16 %v353, %v352
      %v416 = vpack.c.bf16 %v355, %v354
      %v417 = vpack.c.bf16 %v357, %v356
      %v418 = vpack.c.bf16 %v359, %v358
      %v419 = vpack.c.bf16 %v361, %v360
      %v420 = vpack.c.bf16 %v363, %v362
      %v421 = vpack.c.bf16 %v365, %v364
      %v422 = vpack.c.bf16 %v367, %v366
      %v423 = vpack.c.bf16 %v369, %v368
      %v424 = vpack.c.bf16 %v371, %v370
      %v425 = vpack.c.bf16 %v373, %v372
      %v426 = vpack.c.bf16 %v375, %v374
      %v427 = vpack.c.bf16 %v377, %v376
      %v428 = vpack.c.bf16 %v379, %v378
      %v429 = vpack.c.bf16 %v381, %v380
      %v430 = vpack.c.bf16 %v383, %v382
      %v431 = vpack.c.bf16 %v385, %v384
      %v432 = vpack.c.bf16 %v387, %v386
      %v433 = vpack.c.bf16 %v389, %v388
      %v434 = vpack.c.bf16 %v391, %v390
      %v435 = vpack.c.bf16 %v393, %v392
      %v436 = vpack.c.bf16 %v395, %v394
      %v437 = vpack.c.bf16 %v397, %v396
      %v438 = vpack.c.bf16 %v399, %v398
      %v439 = vpack.c.bf16 %v401, %v400
      %v440 = vpack.c.bf16 %v403, %v402
      %v441 = vpack.c.bf16 %v405, %v404
      %v442 = vpack.c.bf16 %v407, %v406
      %v443 = vpack.c.bf16 %v409, %v408
      %v444 = vpack.c.bf16 %v411, %v410
      %v445 = vpack.c.bf16 %v413, %v412
      %v446 = vld [vmem:[%s269] sm:$0xff]
      %v447 = vld [vmem:[%s269 + $0x8] sm:$0xff]
      %v448 = vld [vmem:[%s269 + $0x10] sm:$0xff]
      %v449 = vld [vmem:[%s269 + $0x18] sm:$0xff]
      %v450 = vld [vmem:[%s269 + $0x20] sm:$0xff]
      %v451 = vld [vmem:[%s269 + $0x28] sm:$0xff]
      %v452 = vld [vmem:[%s269 + $0x30] sm:$0xff]
      %v453 = vld [vmem:[%s269 + $0x38] sm:$0xff]
      %v454 = vld [vmem:[%s269 + $0x40] sm:$0xff]
      %v455 = vld [vmem:[%s269 + $0x48] sm:$0xff]
      %v456 = vld [vmem:[%s269 + $0x50] sm:$0xff]
      %v457 = vld [vmem:[%s269 + $0x58] sm:$0xff]
      %v458 = vld [vmem:[%s269 + $0x60] sm:$0xff]
      %v459 = vld [vmem:[%s269 + $0x68] sm:$0xff]
      %v460 = vld [vmem:[%s269 + $0x70] sm:$0xff]
      %v461 = vld [vmem:[%s269 + $0x78] sm:$0xff]
      %v462 = vld [vmem:[%s269 + $0x80] sm:$0xff]
      %v463 = vld [vmem:[%s269 + $0x88] sm:$0xff]
      %v464 = vld [vmem:[%s269 + $0x90] sm:$0xff]
      %v465 = vld [vmem:[%s269 + $0x98] sm:$0xff]
      %v466 = vld [vmem:[%s269 + $0xa0] sm:$0xff]
      %v467 = vld [vmem:[%s269 + $0xa8] sm:$0xff]
      %v468 = vld [vmem:[%s269 + $0xb0] sm:$0xff]
      %v469 = vld [vmem:[%s269 + $0xb8] sm:$0xff]
      %v470 = vld [vmem:[%s269 + $0xc0] sm:$0xff]
      %v471 = vld [vmem:[%s269 + $0xc8] sm:$0xff]
      %v472 = vld [vmem:[%s269 + $0xd0] sm:$0xff]
      %v473 = vld [vmem:[%s269 + $0xd8] sm:$0xff]
      %v474 = vld [vmem:[%s269 + $0xe0] sm:$0xff]
      %v475 = vld [vmem:[%s269 + $0xe8] sm:$0xff]
      %v476 = vld [vmem:[%s269 + $0xf0] sm:$0xff]
      %v477 = vld [vmem:[%s269 + $0xf8] sm:$0xff]
      %v478 = vld [vmem:[%s269 + $0x100] sm:$0xff]
      %v479 = vld [vmem:[%s269 + $0x108] sm:$0xff]
      %v480 = vld [vmem:[%s269 + $0x110] sm:$0xff]
      %v481 = vld [vmem:[%s269 + $0x118] sm:$0xff]
      %v482 = vld [vmem:[%s269 + $0x120] sm:$0xff]
      %v483 = vld [vmem:[%s269 + $0x128] sm:$0xff]
      %v484 = vld [vmem:[%s269 + $0x130] sm:$0xff]
      %v485 = vld [vmem:[%s269 + $0x138] sm:$0xff]
      %v486 = vld [vmem:[%s269 + $0x140] sm:$0xff]
      %v487 = vld [vmem:[%s269 + $0x148] sm:$0xff]
      %v488 = vld [vmem:[%s269 + $0x150] sm:$0xff]
      %v489 = vld [vmem:[%s269 + $0x158] sm:$0xff]
      %v490 = vld [vmem:[%s269 + $0x160] sm:$0xff]
      %v491 = vld [vmem:[%s269 + $0x168] sm:$0xff]
      %v492 = vld [vmem:[%s269 + $0x170] sm:$0xff]
      %v493 = vld [vmem:[%s269 + $0x178] sm:$0xff]
      %v494 = vld [vmem:[%s269 + $0x180] sm:$0xff]
      %v495 = vld [vmem:[%s269 + $0x188] sm:$0xff]
      %v496 = vld [vmem:[%s269 + $0x190] sm:$0xff]
      %v497 = vld [vmem:[%s269 + $0x198] sm:$0xff]
      %v498 = vld [vmem:[%s269 + $0x1a0] sm:$0xff]
      %v499 = vld [vmem:[%s269 + $0x1a8] sm:$0xff]
      %v500 = vld [vmem:[%s269 + $0x1b0] sm:$0xff]
      %v501 = vld [vmem:[%s269 + $0x1b8] sm:$0xff]
      %v502 = vld [vmem:[%s269 + $0x1c0] sm:$0xff]
      %v503 = vld [vmem:[%s269 + $0x1c8] sm:$0xff]
      %v504 = vld [vmem:[%s269 + $0x1d0] sm:$0xff]
      %v505 = vld [vmem:[%s269 + $0x1d8] sm:$0xff]
      %v506 = vld [vmem:[%s269 + $0x1e0] sm:$0xff]
      %v507 = vld [vmem:[%s269 + $0x1e8] sm:$0xff]
      %v508 = vld [vmem:[%s269 + $0x1f0] sm:$0xff]
      %v509 = vld [vmem:[%s269 + $0x1f8] sm:$0xff]
      %v510 = vpack.c.bf16 %v447, %v446
      %v511 = vpack.c.bf16 %v449, %v448
      %v512 = vpack.c.bf16 %v451, %v450
      %v513 = vpack.c.bf16 %v453, %v452
      %v514 = vpack.c.bf16 %v455, %v454
      %v515 = vpack.c.bf16 %v457, %v456
      %v516 = vpack.c.bf16 %v459, %v458
      %v517 = vpack.c.bf16 %v461, %v460
      %v518 = vpack.c.bf16 %v463, %v462
      %v519 = vpack.c.bf16 %v465, %v464
      %v520 = vpack.c.bf16 %v467, %v466
      %v521 = vpack.c.bf16 %v469, %v468
      %v522 = vpack.c.bf16 %v471, %v470
      %v523 = vpack.c.bf16 %v473, %v472
      %v524 = vpack.c.bf16 %v475, %v474
      %v525 = vpack.c.bf16 %v477, %v476
      %v526 = vpack.c.bf16 %v479, %v478
      %v527 = vpack.c.bf16 %v481, %v480
      %v528 = vpack.c.bf16 %v483, %v482
      %v529 = vpack.c.bf16 %v485, %v484
      %v530 = vpack.c.bf16 %v487, %v486
      %v531 = vpack.c.bf16 %v489, %v488
      %v532 = vpack.c.bf16 %v491, %v490
      %v533 = vpack.c.bf16 %v493, %v492
      %v534 = vpack.c.bf16 %v495, %v494
      %v535 = vpack.c.bf16 %v497, %v496
      %v536 = vpack.c.bf16 %v499, %v498
      %v537 = vpack.c.bf16 %v501, %v500
      %v538 = vpack.c.bf16 %v503, %v502
      %v539 = vpack.c.bf16 %v505, %v504
      %v540 = vpack.c.bf16 %v507, %v506
      %v541 = vpack.c.bf16 %v509, %v508
      %v542 = vld [vmem:[%s274] sm:$0xff]
      %v543 = vld [vmem:[%s274 + $0x8] sm:$0xff]
      %v544 = vld [vmem:[%s274 + $0x10] sm:$0xff]
      %v545 = vld [vmem:[%s274 + $0x18] sm:$0xff]
      %v546 = vld [vmem:[%s274 + $0x20] sm:$0xff]
      %v547 = vld [vmem:[%s274 + $0x28] sm:$0xff]
      %v548 = vld [vmem:[%s274 + $0x30] sm:$0xff]
      %v549 = vld [vmem:[%s274 + $0x38] sm:$0xff]
      %v550 = vld [vmem:[%s274 + $0x40] sm:$0xff]
      %v551 = vld [vmem:[%s274 + $0x48] sm:$0xff]
      %v552 = vld [vmem:[%s274 + $0x50] sm:$0xff]
      %v553 = vld [vmem:[%s274 + $0x58] sm:$0xff]
      %v554 = vld [vmem:[%s274 + $0x60] sm:$0xff]
      %v555 = vld [vmem:[%s274 + $0x68] sm:$0xff]
      %v556 = vld [vmem:[%s274 + $0x70] sm:$0xff]
      %v557 = vld [vmem:[%s274 + $0x78] sm:$0xff]
      %v558 = vld [vmem:[%s274 + $0x80] sm:$0xff]
      %v559 = vld [vmem:[%s274 + $0x88] sm:$0xff]
      %v560 = vld [vmem:[%s274 + $0x90] sm:$0xff]
      %v561 = vld [vmem:[%s274 + $0x98] sm:$0xff]
      %v562 = vld [vmem:[%s274 + $0xa0] sm:$0xff]
      %v563 = vld [vmem:[%s274 + $0xa8] sm:$0xff]
      %v564 = vld [vmem:[%s274 + $0xb0] sm:$0xff]
      %v565 = vld [vmem:[%s274 + $0xb8] sm:$0xff]
      %v566 = vld [vmem:[%s274 + $0xc0] sm:$0xff]
      %v567 = vld [vmem:[%s274 + $0xc8] sm:$0xff]
      %v568 = vld [vmem:[%s274 + $0xd0] sm:$0xff]
      %v569 = vld [vmem:[%s274 + $0xd8] sm:$0xff]
      %v570 = vld [vmem:[%s274 + $0xe0] sm:$0xff]
      %v571 = vld [vmem:[%s274 + $0xe8] sm:$0xff]
      %v572 = vld [vmem:[%s274 + $0xf0] sm:$0xff]
      %v573 = vld [vmem:[%s274 + $0xf8] sm:$0xff]
      %v574 = vld [vmem:[%s274 + $0x100] sm:$0xff]
      %v575 = vld [vmem:[%s274 + $0x108] sm:$0xff]
      %v576 = vld [vmem:[%s274 + $0x110] sm:$0xff]
      %v577 = vld [vmem:[%s274 + $0x118] sm:$0xff]
      %v578 = vld [vmem:[%s274 + $0x120] sm:$0xff]
      %v579 = vld [vmem:[%s274 + $0x128] sm:$0xff]
      %v580 = vld [vmem:[%s274 + $0x130] sm:$0xff]
      %v581 = vld [vmem:[%s274 + $0x138] sm:$0xff]
      %v582 = vld [vmem:[%s274 + $0x140] sm:$0xff]
      %v583 = vld [vmem:[%s274 + $0x148] sm:$0xff]
      %v584 = vld [vmem:[%s274 + $0x150] sm:$0xff]
      %v585 = vld [vmem:[%s274 + $0x158] sm:$0xff]
      %v586 = vld [vmem:[%s274 + $0x160] sm:$0xff]
      %v587 = vld [vmem:[%s274 + $0x168] sm:$0xff]
      %v588 = vld [vmem:[%s274 + $0x170] sm:$0xff]
      %v589 = vld [vmem:[%s274 + $0x178] sm:$0xff]
      %v590 = vld [vmem:[%s274 + $0x180] sm:$0xff]
      %v591 = vld [vmem:[%s274 + $0x188] sm:$0xff]
      %v592 = vld [vmem:[%s274 + $0x190] sm:$0xff]
      %v593 = vld [vmem:[%s274 + $0x198] sm:$0xff]
      %v594 = vld [vmem:[%s274 + $0x1a0] sm:$0xff]
      %v595 = vld [vmem:[%s274 + $0x1a8] sm:$0xff]
      %v596 = vld [vmem:[%s274 + $0x1b0] sm:$0xff]
      %v597 = vld [vmem:[%s274 + $0x1b8] sm:$0xff]
      %v598 = vld [vmem:[%s274 + $0x1c0] sm:$0xff]
      %v599 = vld [vmem:[%s274 + $0x1c8] sm:$0xff]
      %v600 = vld [vmem:[%s274 + $0x1d0] sm:$0xff]
      %v601 = vld [vmem:[%s274 + $0x1d8] sm:$0xff]
      %v602 = vld [vmem:[%s274 + $0x1e0] sm:$0xff]
      %v603 = vld [vmem:[%s274 + $0x1e8] sm:$0xff]
      %v604 = vld [vmem:[%s274 + $0x1f0] sm:$0xff]
      %v605 = vld [vmem:[%s274 + $0x1f8] sm:$0xff]
      %v606 = vpack.c.bf16 %v543, %v542
      %v607 = vpack.c.bf16 %v545, %v544
      %v608 = vpack.c.bf16 %v547, %v546
      %v609 = vpack.c.bf16 %v549, %v548
      %v610 = vpack.c.bf16 %v551, %v550
      %v611 = vpack.c.bf16 %v553, %v552
      %v612 = vpack.c.bf16 %v555, %v554
      %v613 = vpack.c.bf16 %v557, %v556
      %v614 = vpack.c.bf16 %v559, %v558
      %v615 = vpack.c.bf16 %v561, %v560
      %v616 = vpack.c.bf16 %v563, %v562
      %v617 = vpack.c.bf16 %v565, %v564
      %v618 = vpack.c.bf16 %v567, %v566
      %v619 = vpack.c.bf16 %v569, %v568
      %v620 = vpack.c.bf16 %v571, %v570
      %v621 = vpack.c.bf16 %v573, %v572
      %v622 = vpack.c.bf16 %v575, %v574
      %v623 = vpack.c.bf16 %v577, %v576
      %v624 = vpack.c.bf16 %v579, %v578
      %v625 = vpack.c.bf16 %v581, %v580
      %v626 = vpack.c.bf16 %v583, %v582
      %v627 = vpack.c.bf16 %v585, %v584
      %v628 = vpack.c.bf16 %v587, %v586
      %v629 = vpack.c.bf16 %v589, %v588
      %v630 = vpack.c.bf16 %v591, %v590
      %v631 = vpack.c.bf16 %v593, %v592
      %v632 = vpack.c.bf16 %v595, %v594
      %v633 = vpack.c.bf16 %v597, %v596
      %v634 = vpack.c.bf16 %v599, %v598
      %v635 = vpack.c.bf16 %v601, %v600
      %v636 = vpack.c.bf16 %v603, %v602
      %v637 = vpack.c.bf16 %v605, %v604
      %v638 = vld [vmem:[%s3] sm:$0xff]
      %v639 = vld [vmem:[%s3 + $0x8] sm:$0xff]
      %v640 = vld [vmem:[%s3 + $0x10] sm:$0xff]
      %v641 = vld [vmem:[%s3 + $0x18] sm:$0xff]
      %v642 = vld [vmem:[%s3 + $0x20] sm:$0xff]
      %v643 = vld [vmem:[%s3 + $0x28] sm:$0xff]
      %v644 = vld [vmem:[%s3 + $0x30] sm:$0xff]
      %v645 = vld [vmem:[%s3 + $0x38] sm:$0xff]
      %v646 = vld [vmem:[%s3 + $0x40] sm:$0xff]
      %v647 = vld [vmem:[%s3 + $0x48] sm:$0xff]
      %v648 = vld [vmem:[%s3 + $0x50] sm:$0xff]
      %v649 = vld [vmem:[%s3 + $0x58] sm:$0xff]
      %v650 = vld [vmem:[%s3 + $0x60] sm:$0xff]
      %v651 = vld [vmem:[%s3 + $0x68] sm:$0xff]
      %v652 = vld [vmem:[%s3 + $0x70] sm:$0xff]
      %v653 = vld [vmem:[%s3 + $0x78] sm:$0xff]
      %v654 = vld [vmem:[%s3 + $0x80] sm:$0xff]
      %v655 = vld [vmem:[%s3 + $0x88] sm:$0xff]
      %v656 = vld [vmem:[%s3 + $0x90] sm:$0xff]
      %v657 = vld [vmem:[%s3 + $0x98] sm:$0xff]
      %v658 = vld [vmem:[%s3 + $0xa0] sm:$0xff]
      %v659 = vld [vmem:[%s3 + $0xa8] sm:$0xff]
      %v660 = vld [vmem:[%s3 + $0xb0] sm:$0xff]
      %v661 = vld [vmem:[%s3 + $0xb8] sm:$0xff]
      %v662 = vld [vmem:[%s3 + $0xc0] sm:$0xff]
      %v663 = vld [vmem:[%s3 + $0xc8] sm:$0xff]
      %v664 = vld [vmem:[%s3 + $0xd0] sm:$0xff]
      %v665 = vld [vmem:[%s3 + $0xd8] sm:$0xff]
      %v666 = vld [vmem:[%s3 + $0xe0] sm:$0xff]
      %v667 = vld [vmem:[%s3 + $0xe8] sm:$0xff]
      %v668 = vld [vmem:[%s3 + $0xf0] sm:$0xff]
      %v669 = vld [vmem:[%s3 + $0xf8] sm:$0xff]
      %v670 = vld [vmem:[%s3 + $0x100] sm:$0xff]
      %v671 = vld [vmem:[%s3 + $0x108] sm:$0xff]
      %v672 = vld [vmem:[%s3 + $0x110] sm:$0xff]
      %v673 = vld [vmem:[%s3 + $0x118] sm:$0xff]
      %v674 = vld [vmem:[%s3 + $0x120] sm:$0xff]
      %v675 = vld [vmem:[%s3 + $0x128] sm:$0xff]
      %v676 = vld [vmem:[%s3 + $0x130] sm:$0xff]
      %v677 = vld [vmem:[%s3 + $0x138] sm:$0xff]
      %v678 = vld [vmem:[%s3 + $0x140] sm:$0xff]
      %v679 = vld [vmem:[%s3 + $0x148] sm:$0xff]
      %v680 = vld [vmem:[%s3 + $0x150] sm:$0xff]
      %v681 = vld [vmem:[%s3 + $0x158] sm:$0xff]
      %v682 = vld [vmem:[%s3 + $0x160] sm:$0xff]
      %v683 = vld [vmem:[%s3 + $0x168] sm:$0xff]
      %v684 = vld [vmem:[%s3 + $0x170] sm:$0xff]
      %v685 = vld [vmem:[%s3 + $0x178] sm:$0xff]
      %v686 = vld [vmem:[%s3 + $0x180] sm:$0xff]
      %v687 = vld [vmem:[%s3 + $0x188] sm:$0xff]
      %v688 = vld [vmem:[%s3 + $0x190] sm:$0xff]
      %v689 = vld [vmem:[%s3 + $0x198] sm:$0xff]
      %v690 = vld [vmem:[%s3 + $0x1a0] sm:$0xff]
      %v691 = vld [vmem:[%s3 + $0x1a8] sm:$0xff]
      %v692 = vld [vmem:[%s3 + $0x1b0] sm:$0xff]
      %v693 = vld [vmem:[%s3 + $0x1b8] sm:$0xff]
      %v694 = vld [vmem:[%s3 + $0x1c0] sm:$0xff]
      %v695 = vld [vmem:[%s3 + $0x1c8] sm:$0xff]
      %v696 = vld [vmem:[%s3 + $0x1d0] sm:$0xff]
      %v697 = vld [vmem:[%s3 + $0x1d8] sm:$0xff]
      %v698 = vld [vmem:[%s3 + $0x1e0] sm:$0xff]
      %v699 = vld [vmem:[%s3 + $0x1e8] sm:$0xff]
      %v700 = vld [vmem:[%s3 + $0x1f0] sm:$0xff]
      %v701 = vld [vmem:[%s3 + $0x1f8] sm:$0xff]
      %vm702 = vcmask 523264
      %v704 = vsel %vm702, %v414, 0
      %v707 = vsel %vm702, %v415, 0
      %v710 = vsel %vm702, %v416, 0
      %v713 = vsel %vm702, %v417, 0
      %v716 = vsel %vm702, %v418, 0
      %v719 = vsel %vm702, %v419, 0
      %v722 = vsel %vm702, %v420, 0
      %v725 = vsel %vm702, %v421, 0
      %v728 = vsel %vm702, %v510, 0
      %v731 = vsel %vm702, %v511, 0
      %v734 = vsel %vm702, %v512, 0
      %v737 = vsel %vm702, %v513, 0
      %v740 = vsel %vm702, %v514, 0
      %v743 = vsel %vm702, %v515, 0
      %v746 = vsel %vm702, %v516, 0
      %v749 = vsel %vm702, %v517, 0
      %751 = vmatprep.subr.bf16.mxu0 0
      %752 = vmatpush1.bf16.xpose.msra.mxu0 %v749
      %753 = vmatprep.subr.bf16.mxu0 0
      %754 = vmatpush1.bf16.xpose.msra.mxu0 %v746
      %755 = vmatprep.subr.bf16.mxu0 0
      %756 = vmatpush1.bf16.xpose.msra.mxu0 %v743
      %757 = vmatprep.subr.bf16.mxu0 0
      %758 = vmatpush1.bf16.xpose.msra.mxu0 %v740
      %759 = vmatprep.subr.bf16.mxu0 0
      %760 = vmatpush1.bf16.xpose.msra.mxu0 %v737
      %761 = vmatprep.subr.bf16.mxu0 0
      %762 = vmatpush1.bf16.xpose.msra.mxu0 %v734
      %763 = vmatprep.subr.bf16.mxu0 0
      %764 = vmatpush1.bf16.xpose.msra.mxu0 %v731
      %765 = vmatprep.subr.bf16.mxu0 0
      %766 = vmatpush1.bf16.xpose.msra.mxu0 %v728
      %767 = vmatprep.subr.bf16.mxu0 0
      %768 = vmatpush2.bf16.xpose.msra.mxu0 0
      %769 = vmatprep.subr.bf16.mxu0 0
      %770 = vmatpush2.bf16.xpose.msra.mxu0 0
      %771 = vmatprep.subr.bf16.mxu0 0
      %772 = vmatpush2.bf16.xpose.msra.mxu0 0
      %773 = vmatprep.subr.bf16.mxu0 0
      %774 = vmatpush2.bf16.xpose.msra.mxu0 0
      %775 = vmatprep.subr.bf16.mxu0 0
      %776 = vmatpush2.bf16.xpose.msra.mxu0 0
      %777 = vmatprep.subr.bf16.mxu0 0
      %778 = vmatpush2.bf16.xpose.msra.mxu0 0
      %779 = vmatprep.subr.bf16.mxu0 0
      %780 = vmatpush2.bf16.xpose.msra.mxu0 0
      %781 = vmatprep.subr.bf16.mxu0 0
      %782 = vmatpush2.bf16.xpose.msra.mxu0 0
      %783 = vmatprep.mubr.bf16.mxu0 0
      %784 = vmatmul.mubr.bf16.gmra.mxu0 %v704
      %v785 = vpop.f32.mrf.mxu0
      %v786 = vadd.f32 %v638, %v785
      %v787 = vpop.f32.mrf.mxu0
      %v788 = vpop.f32.mrf.mxu0
      %v789 = vadd.f32 %v639, %v788
      %v790 = vpop.f32.mrf.mxu0
      %791 = vmatprep.mubr.bf16.mxu0 0
      %792 = vmatmul.mubr.bf16.gmra.mxu0 %v707
      %v793 = vpop.f32.mrf.mxu0
      %v794 = vadd.f32 %v640, %v793
      %v795 = vpop.f32.mrf.mxu0
      %v796 = vpop.f32.mrf.mxu0
      %v797 = vadd.f32 %v641, %v796
      %v798 = vpop.f32.mrf.mxu0
      %799 = vmatprep.mubr.bf16.mxu0 0
      %800 = vmatmul.mubr.bf16.gmra.mxu0 %v710
      %v801 = vpop.f32.mrf.mxu0
      %v802 = vadd.f32 %v642, %v801
      %v803 = vpop.f32.mrf.mxu0
      %v804 = vpop.f32.mrf.mxu0
      %v805 = vadd.f32 %v643, %v804
      %v806 = vpop.f32.mrf.mxu0
      %807 = vmatprep.mubr.bf16.mxu0 0
      %808 = vmatmul.mubr.bf16.gmra.mxu0 %v713
      %v809 = vpop.f32.mrf.mxu0
      %v810 = vadd.f32 %v644, %v809
      %v811 = vpop.f32.mrf.mxu0
      %v812 = vpop.f32.mrf.mxu0
      %v813 = vadd.f32 %v645, %v812
      %v814 = vpop.f32.mrf.mxu0
      %815 = vmatprep.mubr.bf16.mxu0 0
      %816 = vmatmul.mubr.bf16.gmra.mxu0 %v716
      %v817 = vpop.f32.mrf.mxu0
      %v818 = vadd.f32 %v646, %v817
      %v819 = vpop.f32.mrf.mxu0
      %v820 = vpop.f32.mrf.mxu0
      %v821 = vadd.f32 %v647, %v820
      %v822 = vpop.f32.mrf.mxu0
      %823 = vmatprep.mubr.bf16.mxu0 0
      %824 = vmatmul.mubr.bf16.gmra.mxu0 %v719
      %v825 = vpop.f32.mrf.mxu0
      %v826 = vadd.f32 %v648, %v825
      %v827 = vpop.f32.mrf.mxu0
      %v828 = vpop.f32.mrf.mxu0
      %v829 = vadd.f32 %v649, %v828
      %v830 = vpop.f32.mrf.mxu0
      %831 = vmatprep.mubr.bf16.mxu0 0
      %832 = vmatmul.mubr.bf16.gmra.mxu0 %v722
      %v833 = vpop.f32.mrf.mxu0
      %v834 = vadd.f32 %v650, %v833
      %v835 = vpop.f32.mrf.mxu0
      %v836 = vpop.f32.mrf.mxu0
      %v837 = vadd.f32 %v651, %v836
      %v838 = vpop.f32.mrf.mxu0
      %839 = vmatprep.mubr.bf16.mxu0 0
      %840 = vmatmul.mubr.bf16.gmra.mxu0 %v725
      %v841 = vpop.f32.mrf.mxu0
      %v842 = vadd.f32 %v652, %v841
      %v843 = vpop.f32.mrf.mxu0
      %v844 = vpop.f32.mrf.mxu0
      %v845 = vadd.f32 %v653, %v844
      %v846 = vpop.f32.mrf.mxu0
      %847 = vdwg.mxu0
      %v849 = vsel %vm702, %v422, 0
      %v852 = vsel %vm702, %v423, 0
      %v855 = vsel %vm702, %v424, 0
      %v858 = vsel %vm702, %v425, 0
      %v861 = vsel %vm702, %v426, 0
      %v864 = vsel %vm702, %v427, 0
      %v867 = vsel %vm702, %v428, 0
      %v870 = vsel %vm702, %v429, 0
      %v873 = vsel %vm702, %v518, 0
      %v876 = vsel %vm702, %v519, 0
      %v879 = vsel %vm702, %v520, 0
      %v882 = vsel %vm702, %v521, 0
      %v885 = vsel %vm702, %v522, 0
      %v888 = vsel %vm702, %v523, 0
      %v891 = vsel %vm702, %v524, 0
      %v894 = vsel %vm702, %v525, 0
      %896 = vmatprep.subr.bf16.mxu0 0
      %897 = vmatpush1.bf16.xpose.msra.mxu0 %v894
      %898 = vmatprep.subr.bf16.mxu0 0
      %899 = vmatpush1.bf16.xpose.msra.mxu0 %v891
      %900 = vmatprep.subr.bf16.mxu0 0
      %901 = vmatpush1.bf16.xpose.msra.mxu0 %v888
      %902 = vmatprep.subr.bf16.mxu0 0
      %903 = vmatpush1.bf16.xpose.msra.mxu0 %v885
      %904 = vmatprep.subr.bf16.mxu0 0
      %905 = vmatpush1.bf16.xpose.msra.mxu0 %v882
      %906 = vmatprep.subr.bf16.mxu0 0
      %907 = vmatpush1.bf16.xpose.msra.mxu0 %v879
      %908 = vmatprep.subr.bf16.mxu0 0
      %909 = vmatpush1.bf16.xpose.msra.mxu0 %v876
      %910 = vmatprep.subr.bf16.mxu0 0
      %911 = vmatpush1.bf16.xpose.msra.mxu0 %v873
      %912 = vmatprep.subr.bf16.mxu0 0
      %913 = vmatpush2.bf16.xpose.msra.mxu0 0
      %914 = vmatprep.subr.bf16.mxu0 0
      %915 = vmatpush2.bf16.xpose.msra.mxu0 0
      %916 = vmatprep.subr.bf16.mxu0 0
      %917 = vmatpush2.bf16.xpose.msra.mxu0 0
      %918 = vmatprep.subr.bf16.mxu0 0
      %919 = vmatpush2.bf16.xpose.msra.mxu0 0
      %920 = vmatprep.subr.bf16.mxu0 0
      %921 = vmatpush2.bf16.xpose.msra.mxu0 0
      %922 = vmatprep.subr.bf16.mxu0 0
      %923 = vmatpush2.bf16.xpose.msra.mxu0 0
      %924 = vmatprep.subr.bf16.mxu0 0
      %925 = vmatpush2.bf16.xpose.msra.mxu0 0
      %926 = vmatprep.subr.bf16.mxu0 0
      %927 = vmatpush2.bf16.xpose.msra.mxu0 0
      %928 = vmatprep.mubr.bf16.mxu0 0
      %929 = vmatmul.mubr.bf16.gmra.mxu0 %v849
      %v930 = vpop.f32.mrf.mxu0
      %v931 = vadd.f32 %v654, %v930
      %v932 = vpop.f32.mrf.mxu0
      %v933 = vpop.f32.mrf.mxu0
      %v934 = vadd.f32 %v655, %v933
      %v935 = vpop.f32.mrf.mxu0
      %936 = vmatprep.mubr.bf16.mxu0 0
      %937 = vmatmul.mubr.bf16.gmra.mxu0 %v852
      %v938 = vpop.f32.mrf.mxu0
      %v939 = vadd.f32 %v656, %v938
      %v940 = vpop.f32.mrf.mxu0
      %v941 = vpop.f32.mrf.mxu0
      %v942 = vadd.f32 %v657, %v941
      %v943 = vpop.f32.mrf.mxu0
      %944 = vmatprep.mubr.bf16.mxu0 0
      %945 = vmatmul.mubr.bf16.gmra.mxu0 %v855
      %v946 = vpop.f32.mrf.mxu0
      %v947 = vadd.f32 %v658, %v946
      %v948 = vpop.f32.mrf.mxu0
      %v949 = vpop.f32.mrf.mxu0
      %v950 = vadd.f32 %v659, %v949
      %v951 = vpop.f32.mrf.mxu0
      %952 = vmatprep.mubr.bf16.mxu0 0
      %953 = vmatmul.mubr.bf16.gmra.mxu0 %v858
      %v954 = vpop.f32.mrf.mxu0
      %v955 = vadd.f32 %v660, %v954
      %v956 = vpop.f32.mrf.mxu0
      %v957 = vpop.f32.mrf.mxu0
      %v958 = vadd.f32 %v661, %v957
      %v959 = vpop.f32.mrf.mxu0
      %960 = vmatprep.mubr.bf16.mxu0 0
      %961 = vmatmul.mubr.bf16.gmra.mxu0 %v861
      %v962 = vpop.f32.mrf.mxu0
      %v963 = vadd.f32 %v662, %v962
      %v964 = vpop.f32.mrf.mxu0
      %v965 = vpop.f32.mrf.mxu0
      %v966 = vadd.f32 %v663, %v965
      %v967 = vpop.f32.mrf.mxu0
      %968 = vmatprep.mubr.bf16.mxu0 0
      %969 = vmatmul.mubr.bf16.gmra.mxu0 %v864
      %v970 = vpop.f32.mrf.mxu0
      %v971 = vadd.f32 %v664, %v970
      %v972 = vpop.f32.mrf.mxu0
      %v973 = vpop.f32.mrf.mxu0
      %v974 = vadd.f32 %v665, %v973
      %v975 = vpop.f32.mrf.mxu0
      %976 = vmatprep.mubr.bf16.mxu0 0
      %977 = vmatmul.mubr.bf16.gmra.mxu0 %v867
      %v978 = vpop.f32.mrf.mxu0
      %v979 = vadd.f32 %v666, %v978
      %v980 = vpop.f32.mrf.mxu0
      %v981 = vpop.f32.mrf.mxu0
      %v982 = vadd.f32 %v667, %v981
      %v983 = vpop.f32.mrf.mxu0
      %984 = vmatprep.mubr.bf16.mxu0 0
      %985 = vmatmul.mubr.bf16.gmra.mxu0 %v870
      %v986 = vpop.f32.mrf.mxu0
      %v987 = vadd.f32 %v668, %v986
      %v988 = vpop.f32.mrf.mxu0
      %v989 = vpop.f32.mrf.mxu0
      %v990 = vadd.f32 %v669, %v989
      %v991 = vpop.f32.mrf.mxu0
      %992 = vdwg.mxu0
      %v994 = vsel %vm702, %v430, 0
      %v997 = vsel %vm702, %v431, 0
      %v1000 = vsel %vm702, %v432, 0
      %v1003 = vsel %vm702, %v433, 0
      %v1006 = vsel %vm702, %v434, 0
      %v1009 = vsel %vm702, %v435, 0
      %v1012 = vsel %vm702, %v436, 0
      %v1015 = vsel %vm702, %v437, 0
      %v1018 = vsel %vm702, %v526, 0
      %v1021 = vsel %vm702, %v527, 0
      %v1024 = vsel %vm702, %v528, 0
      %v1027 = vsel %vm702, %v529, 0
      %v1030 = vsel %vm702, %v530, 0
      %v1033 = vsel %vm702, %v531, 0
      %v1036 = vsel %vm702, %v532, 0
      %v1039 = vsel %vm702, %v533, 0
      %1041 = vmatprep.subr.bf16.mxu0 0
      %1042 = vmatpush1.bf16.xpose.msra.mxu0 %v1039
      %1043 = vmatprep.subr.bf16.mxu0 0
      %1044 = vmatpush1.bf16.xpose.msra.mxu0 %v1036
      %1045 = vmatprep.subr.bf16.mxu0 0
      %1046 = vmatpush1.bf16.xpose.msra.mxu0 %v1033
      %1047 = vmatprep.subr.bf16.mxu0 0
      %1048 = vmatpush1.bf16.xpose.msra.mxu0 %v1030
      %1049 = vmatprep.subr.bf16.mxu0 0
      %1050 = vmatpush1.bf16.xpose.msra.mxu0 %v1027
      %1051 = vmatprep.subr.bf16.mxu0 0
      %1052 = vmatpush1.bf16.xpose.msra.mxu0 %v1024
      %1053 = vmatprep.subr.bf16.mxu0 0
      %1054 = vmatpush1.bf16.xpose.msra.mxu0 %v1021
      %1055 = vmatprep.subr.bf16.mxu0 0
      %1056 = vmatpush1.bf16.xpose.msra.mxu0 %v1018
      %1057 = vmatprep.subr.bf16.mxu0 0
      %1058 = vmatpush2.bf16.xpose.msra.mxu0 0
      %1059 = vmatprep.subr.bf16.mxu0 0
      %1060 = vmatpush2.bf16.xpose.msra.mxu0 0
      %1061 = vmatprep.subr.bf16.mxu0 0
      %1062 = vmatpush2.bf16.xpose.msra.mxu0 0
      %1063 = vmatprep.subr.bf16.mxu0 0
      %1064 = vmatpush2.bf16.xpose.msra.mxu0 0
      %1065 = vmatprep.subr.bf16.mxu0 0
      %1066 = vmatpush2.bf16.xpose.msra.mxu0 0
      %1067 = vmatprep.subr.bf16.mxu0 0
      %1068 = vmatpush2.bf16.xpose.msra.mxu0 0
      %1069 = vmatprep.subr.bf16.mxu0 0
      %1070 = vmatpush2.bf16.xpose.msra.mxu0 0
      %1071 = vmatprep.subr.bf16.mxu0 0
      %1072 = vmatpush2.bf16.xpose.msra.mxu0 0
      %1073 = vmatprep.mubr.bf16.mxu0 0
      %1074 = vmatmul.mubr.bf16.gmra.mxu0 %v994
      %v1075 = vpop.f32.mrf.mxu0
      %v1076 = vadd.f32 %v670, %v1075
      %v1077 = vpop.f32.mrf.mxu0
      %v1078 = vpop.f32.mrf.mxu0
      %v1079 = vadd.f32 %v671, %v1078
      %v1080 = vpop.f32.mrf.mxu0
      %1081 = vmatprep.mubr.bf16.mxu0 0
      %1082 = vmatmul.mubr.bf16.gmra.mxu0 %v997
      %v1083 = vpop.f32.mrf.mxu0
      %v1084 = vadd.f32 %v672, %v1083
      %v1085 = vpop.f32.mrf.mxu0
      %v1086 = vpop.f32.mrf.mxu0
      %v1087 = vadd.f32 %v673, %v1086
      %v1088 = vpop.f32.mrf.mxu0
      %1089 = vmatprep.mubr.bf16.mxu0 0
      %1090 = vmatmul.mubr.bf16.gmra.mxu0 %v1000
      %v1091 = vpop.f32.mrf.mxu0
      %v1092 = vadd.f32 %v674, %v1091
      %v1093 = vpop.f32.mrf.mxu0
      %v1094 = vpop.f32.mrf.mxu0
      %v1095 = vadd.f32 %v675, %v1094
      %v1096 = vpop.f32.mrf.mxu0
      %1097 = vmatprep.mubr.bf16.mxu0 0
      %1098 = vmatmul.mubr.bf16.gmra.mxu0 %v1003
      %v1099 = vpop.f32.mrf.mxu0
      %v1100 = vadd.f32 %v676, %v1099
      %v1101 = vpop.f32.mrf.mxu0
      %v1102 = vpop.f32.mrf.mxu0
      %v1103 = vadd.f32 %v677, %v1102
      %v1104 = vpop.f32.mrf.mxu0
      %1105 = vmatprep.mubr.bf16.mxu0 0
      %1106 = vmatmul.mubr.bf16.gmra.mxu0 %v1006
      %v1107 = vpop.f32.mrf.mxu0
      %v1108 = vadd.f32 %v678, %v1107
      %v1109 = vpop.f32.mrf.mxu0
      %v1110 = vpop.f32.mrf.mxu0
      %v1111 = vadd.f32 %v679, %v1110
      %v1112 = vpop.f32.mrf.mxu0
      %1113 = vmatprep.mubr.bf16.mxu0 0
      %1114 = vmatmul.mubr.bf16.gmra.mxu0 %v1009
      %v1115 = vpop.f32.mrf.mxu0
      %v1116 = vadd.f32 %v680, %v1115
      %v1117 = vpop.f32.mrf.mxu0
      %v1118 = vpop.f32.mrf.mxu0
      %v1119 = vadd.f32 %v681, %v1118
      %v1120 = vpop.f32.mrf.mxu0
      %1121 = vmatprep.mubr.bf16.mxu0 0
      %1122 = vmatmul.mubr.bf16.gmra.mxu0 %v1012
      %v1123 = vpop.f32.mrf.mxu0
      %v1124 = vadd.f32 %v682, %v1123
      %v1125 = vpop.f32.mrf.mxu0
      %v1126 = vpop.f32.mrf.mxu0
      %v1127 = vadd.f32 %v683, %v1126
      %v1128 = vpop.f32.mrf.mxu0
      %1129 = vmatprep.mubr.bf16.mxu0 0
      %1130 = vmatmul.mubr.bf16.gmra.mxu0 %v1015
      %v1131 = vpop.f32.mrf.mxu0
      %v1132 = vadd.f32 %v684, %v1131
      %v1133 = vpop.f32.mrf.mxu0
      %v1134 = vpop.f32.mrf.mxu0
      %v1135 = vadd.f32 %v685, %v1134
      %v1136 = vpop.f32.mrf.mxu0
      %1137 = vdwg.mxu0
      %v1139 = vsel %vm702, %v438, 0
      %v1142 = vsel %vm702, %v439, 0
      %v1145 = vsel %vm702, %v440, 0
      %v1148 = vsel %vm702, %v441, 0
      %v1151 = vsel %vm702, %v442, 0
      %v1154 = vsel %vm702, %v443, 0
      %v1157 = vsel %vm702, %v444, 0
      %v1160 = vsel %vm702, %v445, 0
      %v1163 = vsel %vm702, %v534, 0
      %v1166 = vsel %vm702, %v535, 0
      %v1169 = vsel %vm702, %v536, 0
      %v1172 = vsel %vm702, %v537, 0
      %v1175 = vsel %vm702, %v538, 0
      %v1178 = vsel %vm702, %v539, 0
      %v1181 = vsel %vm702, %v540, 0
      %v1184 = vsel %vm702, %v541, 0
      %1186 = vmatprep.subr.bf16.mxu0 0
      %1187 = vmatpush1.bf16.xpose.msra.mxu0 %v1184
      %1188 = vmatprep.subr.bf16.mxu0 0
      %1189 = vmatpush1.bf16.xpose.msra.mxu0 %v1181
      %1190 = vmatprep.subr.bf16.mxu0 0
      %1191 = vmatpush1.bf16.xpose.msra.mxu0 %v1178
      %1192 = vmatprep.subr.bf16.mxu0 0
      %1193 = vmatpush1.bf16.xpose.msra.mxu0 %v1175
      %1194 = vmatprep.subr.bf16.mxu0 0
      %1195 = vmatpush1.bf16.xpose.msra.mxu0 %v1172
      %1196 = vmatprep.subr.bf16.mxu0 0
      %1197 = vmatpush1.bf16.xpose.msra.mxu0 %v1169
      %1198 = vmatprep.subr.bf16.mxu0 0
      %1199 = vmatpush1.bf16.xpose.msra.mxu0 %v1166
      %1200 = vmatprep.subr.bf16.mxu0 0
      %1201 = vmatpush1.bf16.xpose.msra.mxu0 %v1163
      %1202 = vmatprep.subr.bf16.mxu0 0
      %1203 = vmatpush2.bf16.xpose.msra.mxu0 0
      %1204 = vmatprep.subr.bf16.mxu0 0
      %1205 = vmatpush2.bf16.xpose.msra.mxu0 0
      %1206 = vmatprep.subr.bf16.mxu0 0
      %1207 = vmatpush2.bf16.xpose.msra.mxu0 0
      %1208 = vmatprep.subr.bf16.mxu0 0
      %1209 = vmatpush2.bf16.xpose.msra.mxu0 0
      %1210 = vmatprep.subr.bf16.mxu0 0
      %1211 = vmatpush2.bf16.xpose.msra.mxu0 0
      %1212 = vmatprep.subr.bf16.mxu0 0
      %1213 = vmatpush2.bf16.xpose.msra.mxu0 0
      %1214 = vmatprep.subr.bf16.mxu0 0
      %1215 = vmatpush2.bf16.xpose.msra.mxu0 0
      %1216 = vmatprep.subr.bf16.mxu0 0
      %1217 = vmatpush2.bf16.xpose.msra.mxu0 0
      %1218 = vmatprep.mubr.bf16.mxu0 0
      %1219 = vmatmul.mubr.bf16.gmra.mxu0 %v1139
      %v1220 = vpop.f32.mrf.mxu0
      %v1221 = vadd.f32 %v686, %v1220
      %v1222 = vpop.f32.mrf.mxu0
      %v1223 = vpop.f32.mrf.mxu0
      %v1224 = vadd.f32 %v687, %v1223
      %v1225 = vpop.f32.mrf.mxu0
      %1226 = vmatprep.mubr.bf16.mxu0 0
      %1227 = vmatmul.mubr.bf16.gmra.mxu0 %v1142
      %v1228 = vpop.f32.mrf.mxu0
      %v1229 = vadd.f32 %v688, %v1228
      %v1230 = vpop.f32.mrf.mxu0
      %v1231 = vpop.f32.mrf.mxu0
      %v1232 = vadd.f32 %v689, %v1231
      %v1233 = vpop.f32.mrf.mxu0
      %1234 = vmatprep.mubr.bf16.mxu0 0
      %1235 = vmatmul.mubr.bf16.gmra.mxu0 %v1145
      %v1236 = vpop.f32.mrf.mxu0
      %v1237 = vadd.f32 %v690, %v1236
      %v1238 = vpop.f32.mrf.mxu0
      %v1239 = vpop.f32.mrf.mxu0
      %v1240 = vadd.f32 %v691, %v1239
      %v1241 = vpop.f32.mrf.mxu0
      %1242 = vmatprep.mubr.bf16.mxu0 0
      %1243 = vmatmul.mubr.bf16.gmra.mxu0 %v1148
      %v1244 = vpop.f32.mrf.mxu0
      %v1245 = vadd.f32 %v692, %v1244
      %v1246 = vpop.f32.mrf.mxu0
      %v1247 = vpop.f32.mrf.mxu0
      %v1248 = vadd.f32 %v693, %v1247
      %v1249 = vpop.f32.mrf.mxu0
      %1250 = vmatprep.mubr.bf16.mxu0 0
      %1251 = vmatmul.mubr.bf16.gmra.mxu0 %v1151
      %v1252 = vpop.f32.mrf.mxu0
      %v1253 = vadd.f32 %v694, %v1252
      %v1254 = vpop.f32.mrf.mxu0
      %v1255 = vpop.f32.mrf.mxu0
      %v1256 = vadd.f32 %v695, %v1255
      %v1257 = vpop.f32.mrf.mxu0
      %1258 = vmatprep.mubr.bf16.mxu0 0
      %1259 = vmatmul.mubr.bf16.gmra.mxu0 %v1154
      %v1260 = vpop.f32.mrf.mxu0
      %v1261 = vadd.f32 %v696, %v1260
      %v1262 = vpop.f32.mrf.mxu0
      %v1263 = vpop.f32.mrf.mxu0
      %v1264 = vadd.f32 %v697, %v1263
      %v1265 = vpop.f32.mrf.mxu0
      %1266 = vmatprep.mubr.bf16.mxu0 0
      %1267 = vmatmul.mubr.bf16.gmra.mxu0 %v1157
      %v1268 = vpop.f32.mrf.mxu0
      %v1269 = vadd.f32 %v698, %v1268
      %v1270 = vpop.f32.mrf.mxu0
      %v1271 = vpop.f32.mrf.mxu0
      %v1272 = vadd.f32 %v699, %v1271
      %v1273 = vpop.f32.mrf.mxu0
      %1274 = vmatprep.mubr.bf16.mxu0 0
      %1275 = vmatmul.mubr.bf16.gmra.mxu0 %v1160
      %v1276 = vpop.f32.mrf.mxu0
      %v1277 = vadd.f32 %v700, %v1276
      %v1278 = vpop.f32.mrf.mxu0
      %v1279 = vpop.f32.mrf.mxu0
      %v1280 = vadd.f32 %v701, %v1279
      %v1281 = vpop.f32.mrf.mxu0
      %1282 = vdwg.mxu0
      %1283 = vmax.xlane.f32.xlu0 %v786
      %v1284 = vpop.xlane.xlu0 %1283
      %1285 = vmax.xlane.f32.xlu0 %v789
      %v1286 = vpop.xlane.xlu0 %1285
      %1287 = vmax.xlane.f32.xlu0 %v794
      %v1288 = vpop.xlane.xlu0 %1287
      %1289 = vmax.xlane.f32.xlu0 %v797
      %v1290 = vpop.xlane.xlu0 %1289
      %1291 = vmax.xlane.f32.xlu0 %v802
      %v1292 = vpop.xlane.xlu0 %1291
      %1293 = vmax.xlane.f32.xlu0 %v805
      %v1294 = vpop.xlane.xlu0 %1293
      %1295 = vmax.xlane.f32.xlu0 %v810
      %v1296 = vpop.xlane.xlu0 %1295
      %1297 = vmax.xlane.f32.xlu0 %v813
      %v1298 = vpop.xlane.xlu0 %1297
      %1299 = vmax.xlane.f32.xlu0 %v818
      %v1300 = vpop.xlane.xlu0 %1299
      %1301 = vmax.xlane.f32.xlu0 %v821
      %v1302 = vpop.xlane.xlu0 %1301
      %1303 = vmax.xlane.f32.xlu0 %v826
      %v1304 = vpop.xlane.xlu0 %1303
      %1305 = vmax.xlane.f32.xlu0 %v829
      %v1306 = vpop.xlane.xlu0 %1305
      %1307 = vmax.xlane.f32.xlu0 %v834
      %v1308 = vpop.xlane.xlu0 %1307
      %1309 = vmax.xlane.f32.xlu0 %v837
      %v1310 = vpop.xlane.xlu0 %1309
      %1311 = vmax.xlane.f32.xlu0 %v842
      %v1312 = vpop.xlane.xlu0 %1311
      %1313 = vmax.xlane.f32.xlu0 %v845
      %v1314 = vpop.xlane.xlu0 %1313
      %1315 = vmax.xlane.f32.xlu0 %v931
      %v1316 = vpop.xlane.xlu0 %1315
      %1317 = vmax.xlane.f32.xlu0 %v934
      %v1318 = vpop.xlane.xlu0 %1317
      %1319 = vmax.xlane.f32.xlu0 %v939
      %v1320 = vpop.xlane.xlu0 %1319
      %1321 = vmax.xlane.f32.xlu0 %v942
      %v1322 = vpop.xlane.xlu0 %1321
      %1323 = vmax.xlane.f32.xlu0 %v947
      %v1324 = vpop.xlane.xlu0 %1323
      %1325 = vmax.xlane.f32.xlu0 %v950
      %v1326 = vpop.xlane.xlu0 %1325
      %1327 = vmax.xlane.f32.xlu0 %v955
      %v1328 = vpop.xlane.xlu0 %1327
      %1329 = vmax.xlane.f32.xlu0 %v958
      %v1330 = vpop.xlane.xlu0 %1329
      %1331 = vmax.xlane.f32.xlu0 %v963
      %v1332 = vpop.xlane.xlu0 %1331
      %1333 = vmax.xlane.f32.xlu0 %v966
      %v1334 = vpop.xlane.xlu0 %1333
      %1335 = vmax.xlane.f32.xlu0 %v971
      %v1336 = vpop.xlane.xlu0 %1335
      %1337 = vmax.xlane.f32.xlu0 %v974
      %v1338 = vpop.xlane.xlu0 %1337
      %1339 = vmax.xlane.f32.xlu0 %v979
      %v1340 = vpop.xlane.xlu0 %1339
      %1341 = vmax.xlane.f32.xlu0 %v982
      %v1342 = vpop.xlane.xlu0 %1341
      %1343 = vmax.xlane.f32.xlu0 %v987
      %v1344 = vpop.xlane.xlu0 %1343
      %1345 = vmax.xlane.f32.xlu0 %v990
      %v1346 = vpop.xlane.xlu0 %1345
      %1347 = vmax.xlane.f32.xlu0 %v1076
      %v1348 = vpop.xlane.xlu0 %1347
      %1349 = vmax.xlane.f32.xlu0 %v1079
      %v1350 = vpop.xlane.xlu0 %1349
      %1351 = vmax.xlane.f32.xlu0 %v1084
      %v1352 = vpop.xlane.xlu0 %1351
      %1353 = vmax.xlane.f32.xlu0 %v1087
      %v1354 = vpop.xlane.xlu0 %1353
      %1355 = vmax.xlane.f32.xlu0 %v1092
      %v1356 = vpop.xlane.xlu0 %1355
      %1357 = vmax.xlane.f32.xlu0 %v1095
      %v1358 = vpop.xlane.xlu0 %1357
      %1359 = vmax.xlane.f32.xlu0 %v1100
      %v1360 = vpop.xlane.xlu0 %1359
      %1361 = vmax.xlane.f32.xlu0 %v1103
      %v1362 = vpop.xlane.xlu0 %1361
      %1363 = vmax.xlane.f32.xlu0 %v1108
      %v1364 = vpop.xlane.xlu0 %1363
      %1365 = vmax.xlane.f32.xlu0 %v1111
      %v1366 = vpop.xlane.xlu0 %1365
      %1367 = vmax.xlane.f32.xlu0 %v1116
      %v1368 = vpop.xlane.xlu0 %1367
      %1369 = vmax.xlane.f32.xlu0 %v1119
      %v1370 = vpop.xlane.xlu0 %1369
      %1371 = vmax.xlane.f32.xlu0 %v1124
      %v1372 = vpop.xlane.xlu0 %1371
      %1373 = vmax.xlane.f32.xlu0 %v1127
      %v1374 = vpop.xlane.xlu0 %1373
      %1375 = vmax.xlane.f32.xlu0 %v1132
      %v1376 = vpop.xlane.xlu0 %1375
      %1377 = vmax.xlane.f32.xlu0 %v1135
      %v1378 = vpop.xlane.xlu0 %1377
      %1379 = vmax.xlane.f32.xlu0 %v1221
      %v1380 = vpop.xlane.xlu0 %1379
      %1381 = vmax.xlane.f32.xlu0 %v1224
      %v1382 = vpop.xlane.xlu0 %1381
      %1383 = vmax.xlane.f32.xlu0 %v1229
      %v1384 = vpop.xlane.xlu0 %1383
      %1385 = vmax.xlane.f32.xlu0 %v1232
      %v1386 = vpop.xlane.xlu0 %1385
      %1387 = vmax.xlane.f32.xlu0 %v1237
      %v1388 = vpop.xlane.xlu0 %1387
      %1389 = vmax.xlane.f32.xlu0 %v1240
      %v1390 = vpop.xlane.xlu0 %1389
      %1391 = vmax.xlane.f32.xlu0 %v1245
      %v1392 = vpop.xlane.xlu0 %1391
      %1393 = vmax.xlane.f32.xlu0 %v1248
      %v1394 = vpop.xlane.xlu0 %1393
      %1395 = vmax.xlane.f32.xlu0 %v1253
      %v1396 = vpop.xlane.xlu0 %1395
      %1397 = vmax.xlane.f32.xlu0 %v1256
      %v1398 = vpop.xlane.xlu0 %1397
      %1399 = vmax.xlane.f32.xlu0 %v1261
      %v1400 = vpop.xlane.xlu0 %1399
      %1401 = vmax.xlane.f32.xlu0 %v1264
      %v1402 = vpop.xlane.xlu0 %1401
      %1403 = vmax.xlane.f32.xlu0 %v1269
      %v1404 = vpop.xlane.xlu0 %1403
      %1405 = vmax.xlane.f32.xlu0 %v1272
      %v1406 = vpop.xlane.xlu0 %1405
      %1407 = vmax.xlane.f32.xlu0 %v1277
      %v1408 = vpop.xlane.xlu0 %1407
      %1409 = vmax.xlane.f32.xlu0 %v1280
      %v1410 = vpop.xlane.xlu0 %1409
      %v1411 = vsub.f32 %v786, %v1284
      %v1412 = vsub.f32 %v789, %v1286
      %v1413 = vsub.f32 %v794, %v1288
      %v1414 = vsub.f32 %v797, %v1290
      %v1415 = vsub.f32 %v802, %v1292
      %v1416 = vsub.f32 %v805, %v1294
      %v1417 = vsub.f32 %v810, %v1296
      %v1418 = vsub.f32 %v813, %v1298
      %v1419 = vsub.f32 %v818, %v1300
      %v1420 = vsub.f32 %v821, %v1302
      %v1421 = vsub.f32 %v826, %v1304
      %v1422 = vsub.f32 %v829, %v1306
      %v1423 = vsub.f32 %v834, %v1308
      %v1424 = vsub.f32 %v837, %v1310
      %v1425 = vsub.f32 %v842, %v1312
      %v1426 = vsub.f32 %v845, %v1314
      %v1427 = vsub.f32 %v931, %v1316
      %v1428 = vsub.f32 %v934, %v1318
      %v1429 = vsub.f32 %v939, %v1320
      %v1430 = vsub.f32 %v942, %v1322
      %v1431 = vsub.f32 %v947, %v1324
      %v1432 = vsub.f32 %v950, %v1326
      %v1433 = vsub.f32 %v955, %v1328
      %v1434 = vsub.f32 %v958, %v1330
      %v1435 = vsub.f32 %v963, %v1332
      %v1436 = vsub.f32 %v966, %v1334
      %v1437 = vsub.f32 %v971, %v1336
      %v1438 = vsub.f32 %v974, %v1338
      %v1439 = vsub.f32 %v979, %v1340
      %v1440 = vsub.f32 %v982, %v1342
      %v1441 = vsub.f32 %v987, %v1344
      %v1442 = vsub.f32 %v990, %v1346
      %v1443 = vsub.f32 %v1076, %v1348
      %v1444 = vsub.f32 %v1079, %v1350
      %v1445 = vsub.f32 %v1084, %v1352
      %v1446 = vsub.f32 %v1087, %v1354
      %v1447 = vsub.f32 %v1092, %v1356
      %v1448 = vsub.f32 %v1095, %v1358
      %v1449 = vsub.f32 %v1100, %v1360
      %v1450 = vsub.f32 %v1103, %v1362
      %v1451 = vsub.f32 %v1108, %v1364
      %v1452 = vsub.f32 %v1111, %v1366
      %v1453 = vsub.f32 %v1116, %v1368
      %v1454 = vsub.f32 %v1119, %v1370
      %v1455 = vsub.f32 %v1124, %v1372
      %v1456 = vsub.f32 %v1127, %v1374
      %v1457 = vsub.f32 %v1132, %v1376
      %v1458 = vsub.f32 %v1135, %v1378
      %v1459 = vsub.f32 %v1221, %v1380
      %v1460 = vsub.f32 %v1224, %v1382
      %v1461 = vsub.f32 %v1229, %v1384
      %v1462 = vsub.f32 %v1232, %v1386
      %v1463 = vsub.f32 %v1237, %v1388
      %v1464 = vsub.f32 %v1240, %v1390
      %v1465 = vsub.f32 %v1245, %v1392
      %v1466 = vsub.f32 %v1248, %v1394
      %v1467 = vsub.f32 %v1253, %v1396
      %v1468 = vsub.f32 %v1256, %v1398
      %v1469 = vsub.f32 %v1261, %v1400
      %v1470 = vsub.f32 %v1264, %v1402
      %v1471 = vsub.f32 %v1269, %v1404
      %v1472 = vsub.f32 %v1272, %v1406
      %v1473 = vsub.f32 %v1277, %v1408
      %v1474 = vsub.f32 %v1280, %v1410
      %v1475 = vmul.f32 %v1411, 1.442695
      %v1476 = vpow.pop %v1475
      %v1477 = vmul.f32 %v1412, 1.442695
      %v1478 = vpow.pop %v1477
      %v1479 = vmul.f32 %v1413, 1.442695
      %v1480 = vpow.pop %v1479
      %v1481 = vmul.f32 %v1414, 1.442695
      %v1482 = vpow.pop %v1481
      %v1483 = vmul.f32 %v1415, 1.442695
      %v1484 = vpow.pop %v1483
      %v1485 = vmul.f32 %v1416, 1.442695
      %v1486 = vpow.pop %v1485
      %v1487 = vmul.f32 %v1417, 1.442695
      %v1488 = vpow.pop %v1487
      %v1489 = vmul.f32 %v1418, 1.442695
      %v1490 = vpow.pop %v1489
      %v1491 = vmul.f32 %v1419, 1.442695
      %v1492 = vpow.pop %v1491
      %v1493 = vmul.f32 %v1420, 1.442695
      %v1494 = vpow.pop %v1493
      %v1495 = vmul.f32 %v1421, 1.442695
      %v1496 = vpow.pop %v1495
      %v1497 = vmul.f32 %v1422, 1.442695
      %v1498 = vpow.pop %v1497
      %v1499 = vmul.f32 %v1423, 1.442695
      %v1500 = vpow.pop %v1499
      %v1501 = vmul.f32 %v1424, 1.442695
      %v1502 = vpow.pop %v1501
      %v1503 = vmul.f32 %v1425, 1.442695
      %v1504 = vpow.pop %v1503
      %v1505 = vmul.f32 %v1426, 1.442695
      %v1506 = vpow.pop %v1505
      %v1507 = vmul.f32 %v1427, 1.442695
      %v1508 = vpow.pop %v1507
      %v1509 = vmul.f32 %v1428, 1.442695
      %v1510 = vpow.pop %v1509
      %v1511 = vmul.f32 %v1429, 1.442695
      %v1512 = vpow.pop %v1511
      %v1513 = vmul.f32 %v1430, 1.442695
      %v1514 = vpow.pop %v1513
      %v1515 = vmul.f32 %v1431, 1.442695
      %v1516 = vpow.pop %v1515
      %v1517 = vmul.f32 %v1432, 1.442695
      %v1518 = vpow.pop %v1517
      %v1519 = vmul.f32 %v1433, 1.442695
      %v1520 = vpow.pop %v1519
      %v1521 = vmul.f32 %v1434, 1.442695
      %v1522 = vpow.pop %v1521
      %v1523 = vmul.f32 %v1435, 1.442695
      %v1524 = vpow.pop %v1523
      %v1525 = vmul.f32 %v1436, 1.442695
      %v1526 = vpow.pop %v1525
      %v1527 = vmul.f32 %v1437, 1.442695
      %v1528 = vpow.pop %v1527
      %v1529 = vmul.f32 %v1438, 1.442695
      %v1530 = vpow.pop %v1529
      %v1531 = vmul.f32 %v1439, 1.442695
      %v1532 = vpow.pop %v1531
      %v1533 = vmul.f32 %v1440, 1.442695
      %v1534 = vpow.pop %v1533
      %v1535 = vmul.f32 %v1441, 1.442695
      %v1536 = vpow.pop %v1535
      %v1537 = vmul.f32 %v1442, 1.442695
      %v1538 = vpow.pop %v1537
      %v1539 = vmul.f32 %v1443, 1.442695
      %v1540 = vpow.pop %v1539
      %v1541 = vmul.f32 %v1444, 1.442695
      %v1542 = vpow.pop %v1541
      %v1543 = vmul.f32 %v1445, 1.442695
      %v1544 = vpow.pop %v1543
      %v1545 = vmul.f32 %v1446, 1.442695
      %v1546 = vpow.pop %v1545
      %v1547 = vmul.f32 %v1447, 1.442695
      %v1548 = vpow.pop %v1547
      %v1549 = vmul.f32 %v1448, 1.442695
      %v1550 = vpow.pop %v1549
      %v1551 = vmul.f32 %v1449, 1.442695
      %v1552 = vpow.pop %v1551
      %v1553 = vmul.f32 %v1450, 1.442695
      %v1554 = vpow.pop %v1553
      %v1555 = vmul.f32 %v1451, 1.442695
      %v1556 = vpow.pop %v1555
      %v1557 = vmul.f32 %v1452, 1.442695
      %v1558 = vpow.pop %v1557
      %v1559 = vmul.f32 %v1453, 1.442695
      %v1560 = vpow.pop %v1559
      %v1561 = vmul.f32 %v1454, 1.442695
      %v1562 = vpow.pop %v1561
      %v1563 = vmul.f32 %v1455, 1.442695
      %v1564 = vpow.pop %v1563
      %v1565 = vmul.f32 %v1456, 1.442695
      %v1566 = vpow.pop %v1565
      %v1567 = vmul.f32 %v1457, 1.442695
      %v1568 = vpow.pop %v1567
      %v1569 = vmul.f32 %v1458, 1.442695
      %v1570 = vpow.pop %v1569
      %v1571 = vmul.f32 %v1459, 1.442695
      %v1572 = vpow.pop %v1571
      %v1573 = vmul.f32 %v1460, 1.442695
      %v1574 = vpow.pop %v1573
      %v1575 = vmul.f32 %v1461, 1.442695
      %v1576 = vpow.pop %v1575
      %v1577 = vmul.f32 %v1462, 1.442695
      %v1578 = vpow.pop %v1577
      %v1579 = vmul.f32 %v1463, 1.442695
      %v1580 = vpow.pop %v1579
      %v1581 = vmul.f32 %v1464, 1.442695
      %v1582 = vpow.pop %v1581
      %v1583 = vmul.f32 %v1465, 1.442695
      %v1584 = vpow.pop %v1583
      %v1585 = vmul.f32 %v1466, 1.442695
      %v1586 = vpow.pop %v1585
      %v1587 = vmul.f32 %v1467, 1.442695
      %v1588 = vpow.pop %v1587
      %v1589 = vmul.f32 %v1468, 1.442695
      %v1590 = vpow.pop %v1589
      %v1591 = vmul.f32 %v1469, 1.442695
      %v1592 = vpow.pop %v1591
      %v1593 = vmul.f32 %v1470, 1.442695
      %v1594 = vpow.pop %v1593
      %v1595 = vmul.f32 %v1471, 1.442695
      %v1596 = vpow.pop %v1595
      %v1597 = vmul.f32 %v1472, 1.442695
      %v1598 = vpow.pop %v1597
      %v1599 = vmul.f32 %v1473, 1.442695
      %v1600 = vpow.pop %v1599
      %v1601 = vmul.f32 %v1474, 1.442695
      %v1602 = vpow.pop %v1601
      %1603 = vadd.xlane.f32.xlu0 %v1476
      %v1604 = vpop.xlane.xlu0 %1603
      %1605 = vadd.xlane.f32.xlu0 %v1478
      %v1606 = vpop.xlane.xlu0 %1605
      %1607 = vadd.xlane.f32.xlu0 %v1480
      %v1608 = vpop.xlane.xlu0 %1607
      %1609 = vadd.xlane.f32.xlu0 %v1482
      %v1610 = vpop.xlane.xlu0 %1609
      %1611 = vadd.xlane.f32.xlu0 %v1484
      %v1612 = vpop.xlane.xlu0 %1611
      %1613 = vadd.xlane.f32.xlu0 %v1486
      %v1614 = vpop.xlane.xlu0 %1613
      %1615 = vadd.xlane.f32.xlu0 %v1488
      %v1616 = vpop.xlane.xlu0 %1615
      %1617 = vadd.xlane.f32.xlu0 %v1490
      %v1618 = vpop.xlane.xlu0 %1617
      %1619 = vadd.xlane.f32.xlu0 %v1492
      %v1620 = vpop.xlane.xlu0 %1619
      %1621 = vadd.xlane.f32.xlu0 %v1494
      %v1622 = vpop.xlane.xlu0 %1621
      %1623 = vadd.xlane.f32.xlu0 %v1496
      %v1624 = vpop.xlane.xlu0 %1623
      %1625 = vadd.xlane.f32.xlu0 %v1498
      %v1626 = vpop.xlane.xlu0 %1625
      %1627 = vadd.xlane.f32.xlu0 %v1500
      %v1628 = vpop.xlane.xlu0 %1627
      %1629 = vadd.xlane.f32.xlu0 %v1502
      %v1630 = vpop.xlane.xlu0 %1629
      %1631 = vadd.xlane.f32.xlu0 %v1504
      %v1632 = vpop.xlane.xlu0 %1631
      %1633 = vadd.xlane.f32.xlu0 %v1506
      %v1634 = vpop.xlane.xlu0 %1633
      %1635 = vadd.xlane.f32.xlu0 %v1508
      %v1636 = vpop.xlane.xlu0 %1635
      %1637 = vadd.xlane.f32.xlu0 %v1510
      %v1638 = vpop.xlane.xlu0 %1637
      %1639 = vadd.xlane.f32.xlu0 %v1512
      %v1640 = vpop.xlane.xlu0 %1639
      %1641 = vadd.xlane.f32.xlu0 %v1514
      %v1642 = vpop.xlane.xlu0 %1641
      %1643 = vadd.xlane.f32.xlu0 %v1516
      %v1644 = vpop.xlane.xlu0 %1643
      %1645 = vadd.xlane.f32.xlu0 %v1518
      %v1646 = vpop.xlane.xlu0 %1645
      %1647 = vadd.xlane.f32.xlu0 %v1520
      %v1648 = vpop.xlane.xlu0 %1647
      %1649 = vadd.xlane.f32.xlu0 %v1522
      %v1650 = vpop.xlane.xlu0 %1649
      %1651 = vadd.xlane.f32.xlu0 %v1524
      %v1652 = vpop.xlane.xlu0 %1651
      %1653 = vadd.xlane.f32.xlu0 %v1526
      %v1654 = vpop.xlane.xlu0 %1653
      %1655 = vadd.xlane.f32.xlu0 %v1528
      %v1656 = vpop.xlane.xlu0 %1655
      %1657 = vadd.xlane.f32.xlu0 %v1530
      %v1658 = vpop.xlane.xlu0 %1657
      %1659 = vadd.xlane.f32.xlu0 %v1532
      %v1660 = vpop.xlane.xlu0 %1659
      %1661 = vadd.xlane.f32.xlu0 %v1534
      %v1662 = vpop.xlane.xlu0 %1661
      %1663 = vadd.xlane.f32.xlu0 %v1536
      %v1664 = vpop.xlane.xlu0 %1663
      %1665 = vadd.xlane.f32.xlu0 %v1538
      %v1666 = vpop.xlane.xlu0 %1665
      %1667 = vadd.xlane.f32.xlu0 %v1540
      %v1668 = vpop.xlane.xlu0 %1667
      %1669 = vadd.xlane.f32.xlu0 %v1542
      %v1670 = vpop.xlane.xlu0 %1669
      %1671 = vadd.xlane.f32.xlu0 %v1544
      %v1672 = vpop.xlane.xlu0 %1671
      %1673 = vadd.xlane.f32.xlu0 %v1546
      %v1674 = vpop.xlane.xlu0 %1673
      %1675 = vadd.xlane.f32.xlu0 %v1548
      %v1676 = vpop.xlane.xlu0 %1675
      %1677 = vadd.xlane.f32.xlu0 %v1550
      %v1678 = vpop.xlane.xlu0 %1677
      %1679 = vadd.xlane.f32.xlu0 %v1552
      %v1680 = vpop.xlane.xlu0 %1679
      %1681 = vadd.xlane.f32.xlu0 %v1554
      %v1682 = vpop.xlane.xlu0 %1681
      %1683 = vadd.xlane.f32.xlu0 %v1556
      %v1684 = vpop.xlane.xlu0 %1683
      %1685 = vadd.xlane.f32.xlu0 %v1558
      %v1686 = vpop.xlane.xlu0 %1685
      %1687 = vadd.xlane.f32.xlu0 %v1560
      %v1688 = vpop.xlane.xlu0 %1687
      %1689 = vadd.xlane.f32.xlu0 %v1562
      %v1690 = vpop.xlane.xlu0 %1689
      %1691 = vadd.xlane.f32.xlu0 %v1564
      %v1692 = vpop.xlane.xlu0 %1691
      %1693 = vadd.xlane.f32.xlu0 %v1566
      %v1694 = vpop.xlane.xlu0 %1693
      %1695 = vadd.xlane.f32.xlu0 %v1568
      %v1696 = vpop.xlane.xlu0 %1695
      %1697 = vadd.xlane.f32.xlu0 %v1570
      %v1698 = vpop.xlane.xlu0 %1697
      %1699 = vadd.xlane.f32.xlu0 %v1572
      %v1700 = vpop.xlane.xlu0 %1699
      %1701 = vadd.xlane.f32.xlu0 %v1574
      %v1702 = vpop.xlane.xlu0 %1701
      %1703 = vadd.xlane.f32.xlu0 %v1576
      %v1704 = vpop.xlane.xlu0 %1703
      %1705 = vadd.xlane.f32.xlu0 %v1578
      %v1706 = vpop.xlane.xlu0 %1705
      %1707 = vadd.xlane.f32.xlu0 %v1580
      %v1708 = vpop.xlane.xlu0 %1707
      %1709 = vadd.xlane.f32.xlu0 %v1582
      %v1710 = vpop.xlane.xlu0 %1709
      %1711 = vadd.xlane.f32.xlu0 %v1584
      %v1712 = vpop.xlane.xlu0 %1711
      %1713 = vadd.xlane.f32.xlu0 %v1586
      %v1714 = vpop.xlane.xlu0 %1713
      %1715 = vadd.xlane.f32.xlu0 %v1588
      %v1716 = vpop.xlane.xlu0 %1715
      %1717 = vadd.xlane.f32.xlu0 %v1590
      %v1718 = vpop.xlane.xlu0 %1717
      %1719 = vadd.xlane.f32.xlu0 %v1592
      %v1720 = vpop.xlane.xlu0 %1719
      %1721 = vadd.xlane.f32.xlu0 %v1594
      %v1722 = vpop.xlane.xlu0 %1721
      %1723 = vadd.xlane.f32.xlu0 %v1596
      %v1724 = vpop.xlane.xlu0 %1723
      %1725 = vadd.xlane.f32.xlu0 %v1598
      %v1726 = vpop.xlane.xlu0 %1725
      %1727 = vadd.xlane.f32.xlu0 %v1600
      %v1728 = vpop.xlane.xlu0 %1727
      %1729 = vadd.xlane.f32.xlu0 %v1602
      %v1730 = vpop.xlane.xlu0 %1729
      %v1731 = vrcp.pop %v1604
      %v1732 = vmul.f32 2.652513, %v1731
      %v1733 = vrcp.pop %v1606
      %v1734 = vmul.f32 2.652513, %v1733
      %v1735 = vrcp.pop %v1608
      %v1736 = vmul.f32 2.652513, %v1735
      %v1737 = vrcp.pop %v1610
      %v1738 = vmul.f32 2.652513, %v1737
      %v1739 = vrcp.pop %v1612
      %v1740 = vmul.f32 2.652513, %v1739
      %v1741 = vrcp.pop %v1614
      %v1742 = vmul.f32 2.652513, %v1741
      %v1743 = vrcp.pop %v1616
      %v1744 = vmul.f32 2.652513, %v1743
      %v1745 = vrcp.pop %v1618
      %v1746 = vmul.f32 2.652513, %v1745
      %v1747 = vrcp.pop %v1620
      %v1748 = vmul.f32 2.652513, %v1747
      %v1749 = vrcp.pop %v1622
      %v1750 = vmul.f32 2.652513, %v1749
      %v1751 = vrcp.pop %v1624
      %v1752 = vmul.f32 2.652513, %v1751
      %v1753 = vrcp.pop %v1626
      %v1754 = vmul.f32 2.652513, %v1753
      %v1755 = vrcp.pop %v1628
      %v1756 = vmul.f32 2.652513, %v1755
      %v1757 = vrcp.pop %v1630
      %v1758 = vmul.f32 2.652513, %v1757
      %v1759 = vrcp.pop %v1632
      %v1760 = vmul.f32 2.652513, %v1759
      %v1761 = vrcp.pop %v1634
      %v1762 = vmul.f32 2.652513, %v1761
      %v1763 = vrcp.pop %v1636
      %v1764 = vmul.f32 2.652513, %v1763
      %v1765 = vrcp.pop %v1638
      %v1766 = vmul.f32 2.652513, %v1765
      %v1767 = vrcp.pop %v1640
      %v1768 = vmul.f32 2.652513, %v1767
      %v1769 = vrcp.pop %v1642
      %v1770 = vmul.f32 2.652513, %v1769
      %v1771 = vrcp.pop %v1644
      %v1772 = vmul.f32 2.652513, %v1771
      %v1773 = vrcp.pop %v1646
      %v1774 = vmul.f32 2.652513, %v1773
      %v1775 = vrcp.pop %v1648
      %v1776 = vmul.f32 2.652513, %v1775
      %v1777 = vrcp.pop %v1650
      %v1778 = vmul.f32 2.652513, %v1777
      %v1779 = vrcp.pop %v1652
      %v1780 = vmul.f32 2.652513, %v1779
      %v1781 = vrcp.pop %v1654
      %v1782 = vmul.f32 2.652513, %v1781
      %v1783 = vrcp.pop %v1656
      %v1784 = vmul.f32 2.652513, %v1783
      %v1785 = vrcp.pop %v1658
      %v1786 = vmul.f32 2.652513, %v1785
      %v1787 = vrcp.pop %v1660
      %v1788 = vmul.f32 2.652513, %v1787
      %v1789 = vrcp.pop %v1662
      %v1790 = vmul.f32 2.652513, %v1789
      %v1791 = vrcp.pop %v1664
      %v1792 = vmul.f32 2.652513, %v1791
      %v1793 = vrcp.pop %v1666
      %v1794 = vmul.f32 2.652513, %v1793
      %v1795 = vrcp.pop %v1668
      %v1796 = vmul.f32 2.652513, %v1795
      %v1797 = vrcp.pop %v1670
      %v1798 = vmul.f32 2.652513, %v1797
      %v1799 = vrcp.pop %v1672
      %v1800 = vmul.f32 2.652513, %v1799
      %v1801 = vrcp.pop %v1674
      %v1802 = vmul.f32 2.652513, %v1801
      %v1803 = vrcp.pop %v1676
      %v1804 = vmul.f32 2.652513, %v1803
      %v1805 = vrcp.pop %v1678
      %v1806 = vmul.f32 2.652513, %v1805
      %v1807 = vrcp.pop %v1680
      %v1808 = vmul.f32 2.652513, %v1807
      %v1809 = vrcp.pop %v1682
      %v1810 = vmul.f32 2.652513, %v1809
      %v1811 = vrcp.pop %v1684
      %v1812 = vmul.f32 2.652513, %v1811
      %v1813 = vrcp.pop %v1686
      %v1814 = vmul.f32 2.652513, %v1813
      %v1815 = vrcp.pop %v1688
      %v1816 = vmul.f32 2.652513, %v1815
      %v1817 = vrcp.pop %v1690
      %v1818 = vmul.f32 2.652513, %v1817
      %v1819 = vrcp.pop %v1692
      %v1820 = vmul.f32 2.652513, %v1819
      %v1821 = vrcp.pop %v1694
      %v1822 = vmul.f32 2.652513, %v1821
      %v1823 = vrcp.pop %v1696
      %v1824 = vmul.f32 2.652513, %v1823
      %v1825 = vrcp.pop %v1698
      %v1826 = vmul.f32 2.652513, %v1825
      %v1827 = vrcp.pop %v1700
      %v1828 = vmul.f32 2.652513, %v1827
      %v1829 = vrcp.pop %v1702
      %v1830 = vmul.f32 2.652513, %v1829
      %v1831 = vrcp.pop %v1704
      %v1832 = vmul.f32 2.652513, %v1831
      %v1833 = vrcp.pop %v1706
      %v1834 = vmul.f32 2.652513, %v1833
      %v1835 = vrcp.pop %v1708
      %v1836 = vmul.f32 2.652513, %v1835
      %v1837 = vrcp.pop %v1710
      %v1838 = vmul.f32 2.652513, %v1837
      %v1839 = vrcp.pop %v1712
      %v1840 = vmul.f32 2.652513, %v1839
      %v1841 = vrcp.pop %v1714
      %v1842 = vmul.f32 2.652513, %v1841
      %v1843 = vrcp.pop %v1716
      %v1844 = vmul.f32 2.652513, %v1843
      %v1845 = vrcp.pop %v1718
      %v1846 = vmul.f32 2.652513, %v1845
      %v1847 = vrcp.pop %v1720
      %v1848 = vmul.f32 2.652513, %v1847
      %v1849 = vrcp.pop %v1722
      %v1850 = vmul.f32 2.652513, %v1849
      %v1851 = vrcp.pop %v1724
      %v1852 = vmul.f32 2.652513, %v1851
      %v1853 = vrcp.pop %v1726
      %v1854 = vmul.f32 2.652513, %v1853
      %v1855 = vrcp.pop %v1728
      %v1856 = vmul.f32 2.652513, %v1855
      %v1857 = vrcp.pop %v1730
      %v1858 = vmul.f32 2.652513, %v1857
      %v1859 = vld [vmem:[%s279] sm:$0xff]
      %v1860 = vld [vmem:[%s279 + $0x8] sm:$0xff]
      %v1861 = vld [vmem:[%s279 + $0x10] sm:$0xff]
      %v1862 = vld [vmem:[%s279 + $0x18] sm:$0xff]
      %v1863 = vld [vmem:[%s279 + $0x20] sm:$0xff]
      %v1864 = vld [vmem:[%s279 + $0x28] sm:$0xff]
      %v1865 = vld [vmem:[%s279 + $0x30] sm:$0xff]
      %v1866 = vld [vmem:[%s279 + $0x38] sm:$0xff]
      %v1867 = vld [vmem:[%s279 + $0x40] sm:$0xff]
      %v1868 = vld [vmem:[%s279 + $0x48] sm:$0xff]
      %v1869 = vld [vmem:[%s279 + $0x50] sm:$0xff]
      %v1870 = vld [vmem:[%s279 + $0x58] sm:$0xff]
      %v1871 = vld [vmem:[%s279 + $0x60] sm:$0xff]
      %v1872 = vld [vmem:[%s279 + $0x68] sm:$0xff]
      %v1873 = vld [vmem:[%s279 + $0x70] sm:$0xff]
      %v1874 = vld [vmem:[%s279 + $0x78] sm:$0xff]
      %v1875 = vld [vmem:[%s279 + $0x80] sm:$0xff]
      %v1876 = vld [vmem:[%s279 + $0x88] sm:$0xff]
      %v1877 = vld [vmem:[%s279 + $0x90] sm:$0xff]
      %v1878 = vld [vmem:[%s279 + $0x98] sm:$0xff]
      %v1879 = vld [vmem:[%s279 + $0xa0] sm:$0xff]
      %v1880 = vld [vmem:[%s279 + $0xa8] sm:$0xff]
      %v1881 = vld [vmem:[%s279 + $0xb0] sm:$0xff]
      %v1882 = vld [vmem:[%s279 + $0xb8] sm:$0xff]
      %v1883 = vld [vmem:[%s279 + $0xc0] sm:$0xff]
      %v1884 = vld [vmem:[%s279 + $0xc8] sm:$0xff]
      %v1885 = vld [vmem:[%s279 + $0xd0] sm:$0xff]
      %v1886 = vld [vmem:[%s279 + $0xd8] sm:$0xff]
      %v1887 = vld [vmem:[%s279 + $0xe0] sm:$0xff]
      %v1888 = vld [vmem:[%s279 + $0xe8] sm:$0xff]
      %v1889 = vld [vmem:[%s279 + $0xf0] sm:$0xff]
      %v1890 = vld [vmem:[%s279 + $0xf8] sm:$0xff]
      %v1891 = vld [vmem:[%s279 + $0x100] sm:$0xff]
      %v1892 = vld [vmem:[%s279 + $0x108] sm:$0xff]
      %v1893 = vld [vmem:[%s279 + $0x110] sm:$0xff]
      %v1894 = vld [vmem:[%s279 + $0x118] sm:$0xff]
      %v1895 = vld [vmem:[%s279 + $0x120] sm:$0xff]
      %v1896 = vld [vmem:[%s279 + $0x128] sm:$0xff]
      %v1897 = vld [vmem:[%s279 + $0x130] sm:$0xff]
      %v1898 = vld [vmem:[%s279 + $0x138] sm:$0xff]
      %v1899 = vld [vmem:[%s279 + $0x140] sm:$0xff]
      %v1900 = vld [vmem:[%s279 + $0x148] sm:$0xff]
      %v1901 = vld [vmem:[%s279 + $0x150] sm:$0xff]
      %v1902 = vld [vmem:[%s279 + $0x158] sm:$0xff]
      %v1903 = vld [vmem:[%s279 + $0x160] sm:$0xff]
      %v1904 = vld [vmem:[%s279 + $0x168] sm:$0xff]
      %v1905 = vld [vmem:[%s279 + $0x170] sm:$0xff]
      %v1906 = vld [vmem:[%s279 + $0x178] sm:$0xff]
      %v1907 = vld [vmem:[%s279 + $0x180] sm:$0xff]
      %v1908 = vld [vmem:[%s279 + $0x188] sm:$0xff]
      %v1909 = vld [vmem:[%s279 + $0x190] sm:$0xff]
      %v1910 = vld [vmem:[%s279 + $0x198] sm:$0xff]
      %v1911 = vld [vmem:[%s279 + $0x1a0] sm:$0xff]
      %v1912 = vld [vmem:[%s279 + $0x1a8] sm:$0xff]
      %v1913 = vld [vmem:[%s279 + $0x1b0] sm:$0xff]
      %v1914 = vld [vmem:[%s279 + $0x1b8] sm:$0xff]
      %v1915 = vld [vmem:[%s279 + $0x1c0] sm:$0xff]
      %v1916 = vld [vmem:[%s279 + $0x1c8] sm:$0xff]
      %v1917 = vld [vmem:[%s279 + $0x1d0] sm:$0xff]
      %v1918 = vld [vmem:[%s279 + $0x1d8] sm:$0xff]
      %v1919 = vld [vmem:[%s279 + $0x1e0] sm:$0xff]
      %v1920 = vld [vmem:[%s279 + $0x1e8] sm:$0xff]
      %v1921 = vld [vmem:[%s279 + $0x1f0] sm:$0xff]
      %v1922 = vld [vmem:[%s279 + $0x1f8] sm:$0xff]
      %vm1923 = vcmp.ge.s32.totalorder %v1859, 528276773
      %vm1924 = vcmp.ge.s32.totalorder %v1860, 528276773
      %vm1925 = vcmp.ge.s32.totalorder %v1861, 528276773
      %vm1926 = vcmp.ge.s32.totalorder %v1862, 528276773
      %vm1927 = vcmp.ge.s32.totalorder %v1863, 528276773
      %vm1928 = vcmp.ge.s32.totalorder %v1864, 528276773
      %vm1929 = vcmp.ge.s32.totalorder %v1865, 528276773
      %vm1930 = vcmp.ge.s32.totalorder %v1866, 528276773
      %vm1931 = vcmp.ge.s32.totalorder %v1867, 528276773
      %vm1932 = vcmp.ge.s32.totalorder %v1868, 528276773
      %vm1933 = vcmp.ge.s32.totalorder %v1869, 528276773
      %vm1934 = vcmp.ge.s32.totalorder %v1870, 528276773
      %vm1935 = vcmp.ge.s32.totalorder %v1871, 528276773
      %vm1936 = vcmp.ge.s32.totalorder %v1872, 528276773
      %vm1937 = vcmp.ge.s32.totalorder %v1873, 528276773
      %vm1938 = vcmp.ge.s32.totalorder %v1874, 528276773
      %vm1939 = vcmp.ge.s32.totalorder %v1875, 528276773
      %vm1940 = vcmp.ge.s32.totalorder %v1876, 528276773
      %vm1941 = vcmp.ge.s32.totalorder %v1877, 528276773
      %vm1942 = vcmp.ge.s32.totalorder %v1878, 528276773
      %vm1943 = vcmp.ge.s32.totalorder %v1879, 528276773
      %vm1944 = vcmp.ge.s32.totalorder %v1880, 528276773
      %vm1945 = vcmp.ge.s32.totalorder %v1881, 528276773
      %vm1946 = vcmp.ge.s32.totalorder %v1882, 528276773
      %vm1947 = vcmp.ge.s32.totalorder %v1883, 528276773
      %vm1948 = vcmp.ge.s32.totalorder %v1884, 528276773
      %vm1949 = vcmp.ge.s32.totalorder %v1885, 528276773
      %vm1950 = vcmp.ge.s32.totalorder %v1886, 528276773
      %vm1951 = vcmp.ge.s32.totalorder %v1887, 528276773
      %vm1952 = vcmp.ge.s32.totalorder %v1888, 528276773
      %vm1953 = vcmp.ge.s32.totalorder %v1889, 528276773
      %vm1954 = vcmp.ge.s32.totalorder %v1890, 528276773
      %vm1955 = vcmp.ge.s32.totalorder %v1891, 528276773
      %vm1956 = vcmp.ge.s32.totalorder %v1892, 528276773
      %vm1957 = vcmp.ge.s32.totalorder %v1893, 528276773
      %vm1958 = vcmp.ge.s32.totalorder %v1894, 528276773
      %vm1959 = vcmp.ge.s32.totalorder %v1895, 528276773
      %vm1960 = vcmp.ge.s32.totalorder %v1896, 528276773
      %vm1961 = vcmp.ge.s32.totalorder %v1897, 528276773
      %vm1962 = vcmp.ge.s32.totalorder %v1898, 528276773
      %vm1963 = vcmp.ge.s32.totalorder %v1899, 528276773
      %vm1964 = vcmp.ge.s32.totalorder %v1900, 528276773
      %vm1965 = vcmp.ge.s32.totalorder %v1901, 528276773
      %vm1966 = vcmp.ge.s32.totalorder %v1902, 528276773
      %vm1967 = vcmp.ge.s32.totalorder %v1903, 528276773
      %vm1968 = vcmp.ge.s32.totalorder %v1904, 528276773
      %vm1969 = vcmp.ge.s32.totalorder %v1905, 528276773
      %vm1970 = vcmp.ge.s32.totalorder %v1906, 528276773
      %vm1971 = vcmp.ge.s32.totalorder %v1907, 528276773
      %vm1972 = vcmp.ge.s32.totalorder %v1908, 528276773
      %vm1973 = vcmp.ge.s32.totalorder %v1909, 528276773
      %vm1974 = vcmp.ge.s32.totalorder %v1910, 528276773
      %vm1975 = vcmp.ge.s32.totalorder %v1911, 528276773
      %vm1976 = vcmp.ge.s32.totalorder %v1912, 528276773
      %vm1977 = vcmp.ge.s32.totalorder %v1913, 528276773
      %vm1978 = vcmp.ge.s32.totalorder %v1914, 528276773
      %vm1979 = vcmp.ge.s32.totalorder %v1915, 528276773
      %vm1980 = vcmp.ge.s32.totalorder %v1916, 528276773
      %vm1981 = vcmp.ge.s32.totalorder %v1917, 528276773
      %vm1982 = vcmp.ge.s32.totalorder %v1918, 528276773
      %vm1983 = vcmp.ge.s32.totalorder %v1919, 528276773
      %vm1984 = vcmp.ge.s32.totalorder %v1920, 528276773
      %vm1985 = vcmp.ge.s32.totalorder %v1921, 528276773
      %vm1986 = vcmp.ge.s32.totalorder %v1922, 528276773
      %v1987 = vmul.f32 %v1476, %v1732
      %v1988 = vmul.f32 %v1478, %v1734
      %v1989 = vmul.f32 %v1480, %v1736
      %v1990 = vmul.f32 %v1482, %v1738
      %v1991 = vmul.f32 %v1484, %v1740
      %v1992 = vmul.f32 %v1486, %v1742
      %v1993 = vmul.f32 %v1488, %v1744
      %v1994 = vmul.f32 %v1490, %v1746
      %v1995 = vmul.f32 %v1492, %v1748
      %v1996 = vmul.f32 %v1494, %v1750
      %v1997 = vmul.f32 %v1496, %v1752
      %v1998 = vmul.f32 %v1498, %v1754
      %v1999 = vmul.f32 %v1500, %v1756
      %v2000 = vmul.f32 %v1502, %v1758
      %v2001 = vmul.f32 %v1504, %v1760
      %v2002 = vmul.f32 %v1506, %v1762
      %v2003 = vmul.f32 %v1508, %v1764
      %v2004 = vmul.f32 %v1510, %v1766
      %v2005 = vmul.f32 %v1512, %v1768
      %v2006 = vmul.f32 %v1514, %v1770
      %v2007 = vmul.f32 %v1516, %v1772
      %v2008 = vmul.f32 %v1518, %v1774
      %v2009 = vmul.f32 %v1520, %v1776
      %v2010 = vmul.f32 %v1522, %v1778
      %v2011 = vmul.f32 %v1524, %v1780
      %v2012 = vmul.f32 %v1526, %v1782
      %v2013 = vmul.f32 %v1528, %v1784
      %v2014 = vmul.f32 %v1530, %v1786
      %v2015 = vmul.f32 %v1532, %v1788
      %v2016 = vmul.f32 %v1534, %v1790
      %v2017 = vmul.f32 %v1536, %v1792
      %v2018 = vmul.f32 %v1538, %v1794
      %v2019 = vmul.f32 %v1540, %v1796
      %v2020 = vmul.f32 %v1542, %v1798
      %v2021 = vmul.f32 %v1544, %v1800
      %v2022 = vmul.f32 %v1546, %v1802
      %v2023 = vmul.f32 %v1548, %v1804
      %v2024 = vmul.f32 %v1550, %v1806
      %v2025 = vmul.f32 %v1552, %v1808
      %v2026 = vmul.f32 %v1554, %v1810
      %v2027 = vmul.f32 %v1556, %v1812
      %v2028 = vmul.f32 %v1558, %v1814
      %v2029 = vmul.f32 %v1560, %v1816
      %v2030 = vmul.f32 %v1562, %v1818
      %v2031 = vmul.f32 %v1564, %v1820
      %v2032 = vmul.f32 %v1566, %v1822
      %v2033 = vmul.f32 %v1568, %v1824
      %v2034 = vmul.f32 %v1570, %v1826
      %v2035 = vmul.f32 %v1572, %v1828
      %v2036 = vmul.f32 %v1574, %v1830
      %v2037 = vmul.f32 %v1576, %v1832
      %v2038 = vmul.f32 %v1578, %v1834
      %v2039 = vmul.f32 %v1580, %v1836
      %v2040 = vmul.f32 %v1582, %v1838
      %v2041 = vmul.f32 %v1584, %v1840
      %v2042 = vmul.f32 %v1586, %v1842
      %v2043 = vmul.f32 %v1588, %v1844
      %v2044 = vmul.f32 %v1590, %v1846
      %v2045 = vmul.f32 %v1592, %v1848
      %v2046 = vmul.f32 %v1594, %v1850
      %v2047 = vmul.f32 %v1596, %v1852
      %v2048 = vmul.f32 %v1598, %v1854
      %v2049 = vmul.f32 %v1600, %v1856
      %v2050 = vmul.f32 %v1602, %v1858
      %v2051 = vsel %vm1923, %v1987, 0.0
      %v2052 = vsel %vm1924, %v1988, 0.0
      %v2053 = vsel %vm1925, %v1989, 0.0
      %v2054 = vsel %vm1926, %v1990, 0.0
      %v2055 = vsel %vm1927, %v1991, 0.0
      %v2056 = vsel %vm1928, %v1992, 0.0
      %v2057 = vsel %vm1929, %v1993, 0.0
      %v2058 = vsel %vm1930, %v1994, 0.0
      %v2059 = vsel %vm1931, %v1995, 0.0
      %v2060 = vsel %vm1932, %v1996, 0.0
      %v2061 = vsel %vm1933, %v1997, 0.0
      %v2062 = vsel %vm1934, %v1998, 0.0
      %v2063 = vsel %vm1935, %v1999, 0.0
      %v2064 = vsel %vm1936, %v2000, 0.0
      %v2065 = vsel %vm1937, %v2001, 0.0
      %v2066 = vsel %vm1938, %v2002, 0.0
      %v2067 = vsel %vm1939, %v2003, 0.0
      %v2068 = vsel %vm1940, %v2004, 0.0
      %v2069 = vsel %vm1941, %v2005, 0.0
      %v2070 = vsel %vm1942, %v2006, 0.0
      %v2071 = vsel %vm1943, %v2007, 0.0
      %v2072 = vsel %vm1944, %v2008, 0.0
      %v2073 = vsel %vm1945, %v2009, 0.0
      %v2074 = vsel %vm1946, %v2010, 0.0
      %v2075 = vsel %vm1947, %v2011, 0.0
      %v2076 = vsel %vm1948, %v2012, 0.0
      %v2077 = vsel %vm1949, %v2013, 0.0
      %v2078 = vsel %vm1950, %v2014, 0.0
      %v2079 = vsel %vm1951, %v2015, 0.0
      %v2080 = vsel %vm1952, %v2016, 0.0
      %v2081 = vsel %vm1953, %v2017, 0.0
      %v2082 = vsel %vm1954, %v2018, 0.0
      %v2083 = vsel %vm1955, %v2019, 0.0
      %v2084 = vsel %vm1956, %v2020, 0.0
      %v2085 = vsel %vm1957, %v2021, 0.0
      %v2086 = vsel %vm1958, %v2022, 0.0
      %v2087 = vsel %vm1959, %v2023, 0.0
      %v2088 = vsel %vm1960, %v2024, 0.0
      %v2089 = vsel %vm1961, %v2025, 0.0
      %v2090 = vsel %vm1962, %v2026, 0.0
      %v2091 = vsel %vm1963, %v2027, 0.0
      %v2092 = vsel %vm1964, %v2028, 0.0
      %v2093 = vsel %vm1965, %v2029, 0.0
      %v2094 = vsel %vm1966, %v2030, 0.0
      %v2095 = vsel %vm1967, %v2031, 0.0
      %v2096 = vsel %vm1968, %v2032, 0.0
      %v2097 = vsel %vm1969, %v2033, 0.0
      %v2098 = vsel %vm1970, %v2034, 0.0
      %v2099 = vsel %vm1971, %v2035, 0.0
      %v2100 = vsel %vm1972, %v2036, 0.0
      %v2101 = vsel %vm1973, %v2037, 0.0
      %v2102 = vsel %vm1974, %v2038, 0.0
      %v2103 = vsel %vm1975, %v2039, 0.0
      %v2104 = vsel %vm1976, %v2040, 0.0
      %v2105 = vsel %vm1977, %v2041, 0.0
      %v2106 = vsel %vm1978, %v2042, 0.0
      %v2107 = vsel %vm1979, %v2043, 0.0
      %v2108 = vsel %vm1980, %v2044, 0.0
      %v2109 = vsel %vm1981, %v2045, 0.0
      %v2110 = vsel %vm1982, %v2046, 0.0
      %v2111 = vsel %vm1983, %v2047, 0.0
      %v2112 = vsel %vm1984, %v2048, 0.0
      %v2113 = vsel %vm1985, %v2049, 0.0
      %v2114 = vsel %vm1986, %v2050, 0.0
      %v2115 = vpack.c.bf16 %v2052, %v2051
      %v2116 = vpack.c.bf16 %v2054, %v2053
      %v2117 = vpack.c.bf16 %v2056, %v2055
      %v2118 = vpack.c.bf16 %v2058, %v2057
      %v2119 = vpack.c.bf16 %v2060, %v2059
      %v2120 = vpack.c.bf16 %v2062, %v2061
      %v2121 = vpack.c.bf16 %v2064, %v2063
      %v2122 = vpack.c.bf16 %v2066, %v2065
      %v2123 = vpack.c.bf16 %v2068, %v2067
      %v2124 = vpack.c.bf16 %v2070, %v2069
      %v2125 = vpack.c.bf16 %v2072, %v2071
      %v2126 = vpack.c.bf16 %v2074, %v2073
      %v2127 = vpack.c.bf16 %v2076, %v2075
      %v2128 = vpack.c.bf16 %v2078, %v2077
      %v2129 = vpack.c.bf16 %v2080, %v2079
      %v2130 = vpack.c.bf16 %v2082, %v2081
      %v2131 = vpack.c.bf16 %v2084, %v2083
      %v2132 = vpack.c.bf16 %v2086, %v2085
      %v2133 = vpack.c.bf16 %v2088, %v2087
      %v2134 = vpack.c.bf16 %v2090, %v2089
      %v2135 = vpack.c.bf16 %v2092, %v2091
      %v2136 = vpack.c.bf16 %v2094, %v2093
      %v2137 = vpack.c.bf16 %v2096, %v2095
      %v2138 = vpack.c.bf16 %v2098, %v2097
      %v2139 = vpack.c.bf16 %v2100, %v2099
      %v2140 = vpack.c.bf16 %v2102, %v2101
      %v2141 = vpack.c.bf16 %v2104, %v2103
      %v2142 = vpack.c.bf16 %v2106, %v2105
      %v2143 = vpack.c.bf16 %v2108, %v2107
      %v2144 = vpack.c.bf16 %v2110, %v2109
      %v2145 = vpack.c.bf16 %v2112, %v2111
      %v2146 = vpack.c.bf16 %v2114, %v2113
      %2147 = vmatprep.subr.bf16.mxu0 0
      %2148 = vmatpush1.bf16.msra.mxu0 %v613
      %2149 = vmatprep.subr.bf16.mxu0 0
      %2150 = vmatpush1.bf16.msra.mxu0 %v612
      %2151 = vmatprep.subr.bf16.mxu0 0
      %2152 = vmatpush1.bf16.msra.mxu0 %v611
      %2153 = vmatprep.subr.bf16.mxu0 0
      %2154 = vmatpush1.bf16.msra.mxu0 %v610
      %2155 = vmatprep.subr.bf16.mxu0 0
      %2156 = vmatpush1.bf16.msra.mxu0 %v609
      %2157 = vmatprep.subr.bf16.mxu0 0
      %2158 = vmatpush1.bf16.msra.mxu0 %v608
      %2159 = vmatprep.subr.bf16.mxu0 0
      %2160 = vmatpush1.bf16.msra.mxu0 %v607
      %2161 = vmatprep.subr.bf16.mxu0 0
      %2162 = vmatpush1.bf16.msra.mxu0 %v606
      %2163 = vmatprep.subr.bf16.mxu0 0
      %2164 = vmatpush2.bf16.msra.mxu0 0
      %2165 = vmatprep.subr.bf16.mxu0 0
      %2166 = vmatpush2.bf16.msra.mxu0 0
      %2167 = vmatprep.subr.bf16.mxu0 0
      %2168 = vmatpush2.bf16.msra.mxu0 0
      %2169 = vmatprep.subr.bf16.mxu0 0
      %2170 = vmatpush2.bf16.msra.mxu0 0
      %2171 = vmatprep.subr.bf16.mxu0 0
      %2172 = vmatpush2.bf16.msra.mxu0 0
      %2173 = vmatprep.subr.bf16.mxu0 0
      %2174 = vmatpush2.bf16.msra.mxu0 0
      %2175 = vmatprep.subr.bf16.mxu0 0
      %2176 = vmatpush2.bf16.msra.mxu0 0
      %2177 = vmatprep.subr.bf16.mxu0 0
      %2178 = vmatpush2.bf16.msra.mxu0 0
      %2179 = vmatprep.mubr.bf16.mxu0 0
      %2180 = vmatmul.mubr.bf16.gmra.mxu0 %v2115
      %v2181 = vpop.f32.mrf.mxu0
      %v2182 = vadd.f32 0.0, %v2181
      %v2183 = vpop.f32.mrf.mxu0
      %v2184 = vpop.f32.mrf.mxu0
      %v2185 = vadd.f32 0.0, %v2184
      %v2186 = vpop.f32.mrf.mxu0
      %2187 = vmatprep.mubr.bf16.mxu0 0
      %2188 = vmatmul.mubr.bf16.gmra.mxu0 %v2116
      %v2189 = vpop.f32.mrf.mxu0
      %v2190 = vadd.f32 0.0, %v2189
      %v2191 = vpop.f32.mrf.mxu0
      %v2192 = vpop.f32.mrf.mxu0
      %v2193 = vadd.f32 0.0, %v2192
      %v2194 = vpop.f32.mrf.mxu0
      %2195 = vmatprep.mubr.bf16.mxu0 0
      %2196 = vmatmul.mubr.bf16.gmra.mxu0 %v2117
      %v2197 = vpop.f32.mrf.mxu0
      %v2198 = vadd.f32 0.0, %v2197
      %v2199 = vpop.f32.mrf.mxu0
      %v2200 = vpop.f32.mrf.mxu0
      %v2201 = vadd.f32 0.0, %v2200
      %v2202 = vpop.f32.mrf.mxu0
      %2203 = vmatprep.mubr.bf16.mxu0 0
      %2204 = vmatmul.mubr.bf16.gmra.mxu0 %v2118
      %v2205 = vpop.f32.mrf.mxu0
      %v2206 = vadd.f32 0.0, %v2205
      %v2207 = vpop.f32.mrf.mxu0
      %v2208 = vpop.f32.mrf.mxu0
      %v2209 = vadd.f32 0.0, %v2208
      %v2210 = vpop.f32.mrf.mxu0
      %2211 = vmatprep.mubr.bf16.mxu0 0
      %2212 = vmatmul.mubr.bf16.gmra.mxu0 %v2119
      %v2213 = vpop.f32.mrf.mxu0
      %v2214 = vadd.f32 0.0, %v2213
      %v2215 = vpop.f32.mrf.mxu0
      %v2216 = vpop.f32.mrf.mxu0
      %v2217 = vadd.f32 0.0, %v2216
      %v2218 = vpop.f32.mrf.mxu0
      %2219 = vmatprep.mubr.bf16.mxu0 0
      %2220 = vmatmul.mubr.bf16.gmra.mxu0 %v2120
      %v2221 = vpop.f32.mrf.mxu0
      %v2222 = vadd.f32 0.0, %v2221
      %v2223 = vpop.f32.mrf.mxu0
      %v2224 = vpop.f32.mrf.mxu0
      %v2225 = vadd.f32 0.0, %v2224
      %v2226 = vpop.f32.mrf.mxu0
      %2227 = vmatprep.mubr.bf16.mxu0 0
      %2228 = vmatmul.mubr.bf16.gmra.mxu0 %v2121
      %v2229 = vpop.f32.mrf.mxu0
      %v2230 = vadd.f32 0.0, %v2229
      %v2231 = vpop.f32.mrf.mxu0
      %v2232 = vpop.f32.mrf.mxu0
      %v2233 = vadd.f32 0.0, %v2232
      %v2234 = vpop.f32.mrf.mxu0
      %2235 = vmatprep.mubr.bf16.mxu0 0
      %2236 = vmatmul.mubr.bf16.gmra.mxu0 %v2122
      %v2237 = vpop.f32.mrf.mxu0
      %v2238 = vadd.f32 0.0, %v2237
      %v2239 = vpop.f32.mrf.mxu0
      %v2240 = vpop.f32.mrf.mxu0
      %v2241 = vadd.f32 0.0, %v2240
      %v2242 = vpop.f32.mrf.mxu0
      %2243 = vdwg.mxu0
      %2244 = vmatprep.subr.bf16.mxu0 0
      %2245 = vmatpush1.bf16.msra.mxu0 %v621
      %2246 = vmatprep.subr.bf16.mxu0 0
      %2247 = vmatpush1.bf16.msra.mxu0 %v620
      %2248 = vmatprep.subr.bf16.mxu0 0
      %2249 = vmatpush1.bf16.msra.mxu0 %v619
      %2250 = vmatprep.subr.bf16.mxu0 0
      %2251 = vmatpush1.bf16.msra.mxu0 %v618
      %2252 = vmatprep.subr.bf16.mxu0 0
      %2253 = vmatpush1.bf16.msra.mxu0 %v617
      %2254 = vmatprep.subr.bf16.mxu0 0
      %2255 = vmatpush1.bf16.msra.mxu0 %v616
      %2256 = vmatprep.subr.bf16.mxu0 0
      %2257 = vmatpush1.bf16.msra.mxu0 %v615
      %2258 = vmatprep.subr.bf16.mxu0 0
      %2259 = vmatpush1.bf16.msra.mxu0 %v614
      %2260 = vmatprep.subr.bf16.mxu0 0
      %2261 = vmatpush2.bf16.msra.mxu0 0
      %2262 = vmatprep.subr.bf16.mxu0 0
      %2263 = vmatpush2.bf16.msra.mxu0 0
      %2264 = vmatprep.subr.bf16.mxu0 0
      %2265 = vmatpush2.bf16.msra.mxu0 0
      %2266 = vmatprep.subr.bf16.mxu0 0
      %2267 = vmatpush2.bf16.msra.mxu0 0
      %2268 = vmatprep.subr.bf16.mxu0 0
      %2269 = vmatpush2.bf16.msra.mxu0 0
      %2270 = vmatprep.subr.bf16.mxu0 0
      %2271 = vmatpush2.bf16.msra.mxu0 0
      %2272 = vmatprep.subr.bf16.mxu0 0
      %2273 = vmatpush2.bf16.msra.mxu0 0
      %2274 = vmatprep.subr.bf16.mxu0 0
      %2275 = vmatpush2.bf16.msra.mxu0 0
      %2276 = vmatprep.mubr.bf16.mxu0 0
      %2277 = vmatmul.mubr.bf16.gmra.mxu0 %v2123
      %v2278 = vpop.f32.mrf.mxu0
      %v2279 = vadd.f32 0.0, %v2278
      %v2280 = vpop.f32.mrf.mxu0
      %v2281 = vpop.f32.mrf.mxu0
      %v2282 = vadd.f32 0.0, %v2281
      %v2283 = vpop.f32.mrf.mxu0
      %2284 = vmatprep.mubr.bf16.mxu0 0
      %2285 = vmatmul.mubr.bf16.gmra.mxu0 %v2124
      %v2286 = vpop.f32.mrf.mxu0
      %v2287 = vadd.f32 0.0, %v2286
      %v2288 = vpop.f32.mrf.mxu0
      %v2289 = vpop.f32.mrf.mxu0
      %v2290 = vadd.f32 0.0, %v2289
      %v2291 = vpop.f32.mrf.mxu0
      %2292 = vmatprep.mubr.bf16.mxu0 0
      %2293 = vmatmul.mubr.bf16.gmra.mxu0 %v2125
      %v2294 = vpop.f32.mrf.mxu0
      %v2295 = vadd.f32 0.0, %v2294
      %v2296 = vpop.f32.mrf.mxu0
      %v2297 = vpop.f32.mrf.mxu0
      %v2298 = vadd.f32 0.0, %v2297
      %v2299 = vpop.f32.mrf.mxu0
      %2300 = vmatprep.mubr.bf16.mxu0 0
      %2301 = vmatmul.mubr.bf16.gmra.mxu0 %v2126
      %v2302 = vpop.f32.mrf.mxu0
      %v2303 = vadd.f32 0.0, %v2302
      %v2304 = vpop.f32.mrf.mxu0
      %v2305 = vpop.f32.mrf.mxu0
      %v2306 = vadd.f32 0.0, %v2305
      %v2307 = vpop.f32.mrf.mxu0
      %2308 = vmatprep.mubr.bf16.mxu0 0
      %2309 = vmatmul.mubr.bf16.gmra.mxu0 %v2127
      %v2310 = vpop.f32.mrf.mxu0
      %v2311 = vadd.f32 0.0, %v2310
      %v2312 = vpop.f32.mrf.mxu0
      %v2313 = vpop.f32.mrf.mxu0
      %v2314 = vadd.f32 0.0, %v2313
      %v2315 = vpop.f32.mrf.mxu0
      %2316 = vmatprep.mubr.bf16.mxu0 0
      %2317 = vmatmul.mubr.bf16.gmra.mxu0 %v2128
      %v2318 = vpop.f32.mrf.mxu0
      %v2319 = vadd.f32 0.0, %v2318
      %v2320 = vpop.f32.mrf.mxu0
      %v2321 = vpop.f32.mrf.mxu0
      %v2322 = vadd.f32 0.0, %v2321
      %v2323 = vpop.f32.mrf.mxu0
      %2324 = vmatprep.mubr.bf16.mxu0 0
      %2325 = vmatmul.mubr.bf16.gmra.mxu0 %v2129
      %v2326 = vpop.f32.mrf.mxu0
      %v2327 = vadd.f32 0.0, %v2326
      %v2328 = vpop.f32.mrf.mxu0
      %v2329 = vpop.f32.mrf.mxu0
      %v2330 = vadd.f32 0.0, %v2329
      %v2331 = vpop.f32.mrf.mxu0
      %2332 = vmatprep.mubr.bf16.mxu0 0
      %2333 = vmatmul.mubr.bf16.gmra.mxu0 %v2130
      %v2334 = vpop.f32.mrf.mxu0
      %v2335 = vadd.f32 0.0, %v2334
      %v2336 = vpop.f32.mrf.mxu0
      %v2337 = vpop.f32.mrf.mxu0
      %v2338 = vadd.f32 0.0, %v2337
      %v2339 = vpop.f32.mrf.mxu0
      %2340 = vdwg.mxu0
      %2341 = vmatprep.subr.bf16.mxu0 0
      %2342 = vmatpush1.bf16.msra.mxu0 %v629
      %2343 = vmatprep.subr.bf16.mxu0 0
      %2344 = vmatpush1.bf16.msra.mxu0 %v628
      %2345 = vmatprep.subr.bf16.mxu0 0
      %2346 = vmatpush1.bf16.msra.mxu0 %v627
      %2347 = vmatprep.subr.bf16.mxu0 0
      %2348 = vmatpush1.bf16.msra.mxu0 %v626
      %2349 = vmatprep.subr.bf16.mxu0 0
      %2350 = vmatpush1.bf16.msra.mxu0 %v625
      %2351 = vmatprep.subr.bf16.mxu0 0
      %2352 = vmatpush1.bf16.msra.mxu0 %v624
      %2353 = vmatprep.subr.bf16.mxu0 0
      %2354 = vmatpush1.bf16.msra.mxu0 %v623
      %2355 = vmatprep.subr.bf16.mxu0 0
      %2356 = vmatpush1.bf16.msra.mxu0 %v622
      %2357 = vmatprep.subr.bf16.mxu0 0
      %2358 = vmatpush2.bf16.msra.mxu0 0
      %2359 = vmatprep.subr.bf16.mxu0 0
      %2360 = vmatpush2.bf16.msra.mxu0 0
      %2361 = vmatprep.subr.bf16.mxu0 0
      %2362 = vmatpush2.bf16.msra.mxu0 0
      %2363 = vmatprep.subr.bf16.mxu0 0
      %2364 = vmatpush2.bf16.msra.mxu0 0
      %2365 = vmatprep.subr.bf16.mxu0 0
      %2366 = vmatpush2.bf16.msra.mxu0 0
      %2367 = vmatprep.subr.bf16.mxu0 0
      %2368 = vmatpush2.bf16.msra.mxu0 0
      %2369 = vmatprep.subr.bf16.mxu0 0
      %2370 = vmatpush2.bf16.msra.mxu0 0
      %2371 = vmatprep.subr.bf16.mxu0 0
      %2372 = vmatpush2.bf16.msra.mxu0 0
      %2373 = vmatprep.mubr.bf16.mxu0 0
      %2374 = vmatmul.mubr.bf16.gmra.mxu0 %v2131
      %v2375 = vpop.f32.mrf.mxu0
      %v2376 = vadd.f32 0.0, %v2375
      %v2377 = vpop.f32.mrf.mxu0
      %v2378 = vpop.f32.mrf.mxu0
      %v2379 = vadd.f32 0.0, %v2378
      %v2380 = vpop.f32.mrf.mxu0
      %2381 = vmatprep.mubr.bf16.mxu0 0
      %2382 = vmatmul.mubr.bf16.gmra.mxu0 %v2132
      %v2383 = vpop.f32.mrf.mxu0
      %v2384 = vadd.f32 0.0, %v2383
      %v2385 = vpop.f32.mrf.mxu0
      %v2386 = vpop.f32.mrf.mxu0
      %v2387 = vadd.f32 0.0, %v2386
      %v2388 = vpop.f32.mrf.mxu0
      %2389 = vmatprep.mubr.bf16.mxu0 0
      %2390 = vmatmul.mubr.bf16.gmra.mxu0 %v2133
      %v2391 = vpop.f32.mrf.mxu0
      %v2392 = vadd.f32 0.0, %v2391
      %v2393 = vpop.f32.mrf.mxu0
      %v2394 = vpop.f32.mrf.mxu0
      %v2395 = vadd.f32 0.0, %v2394
      %v2396 = vpop.f32.mrf.mxu0
      %2397 = vmatprep.mubr.bf16.mxu0 0
      %2398 = vmatmul.mubr.bf16.gmra.mxu0 %v2134
      %v2399 = vpop.f32.mrf.mxu0
      %v2400 = vadd.f32 0.0, %v2399
      %v2401 = vpop.f32.mrf.mxu0
      %v2402 = vpop.f32.mrf.mxu0
      %v2403 = vadd.f32 0.0, %v2402
      %v2404 = vpop.f32.mrf.mxu0
      %2405 = vmatprep.mubr.bf16.mxu0 0
      %2406 = vmatmul.mubr.bf16.gmra.mxu0 %v2135
      %v2407 = vpop.f32.mrf.mxu0
      %v2408 = vadd.f32 0.0, %v2407
      %v2409 = vpop.f32.mrf.mxu0
      %v2410 = vpop.f32.mrf.mxu0
      %v2411 = vadd.f32 0.0, %v2410
      %v2412 = vpop.f32.mrf.mxu0
      %2413 = vmatprep.mubr.bf16.mxu0 0
      %2414 = vmatmul.mubr.bf16.gmra.mxu0 %v2136
      %v2415 = vpop.f32.mrf.mxu0
      %v2416 = vadd.f32 0.0, %v2415
      %v2417 = vpop.f32.mrf.mxu0
      %v2418 = vpop.f32.mrf.mxu0
      %v2419 = vadd.f32 0.0, %v2418
      %v2420 = vpop.f32.mrf.mxu0
      %2421 = vmatprep.mubr.bf16.mxu0 0
      %2422 = vmatmul.mubr.bf16.gmra.mxu0 %v2137
      %v2423 = vpop.f32.mrf.mxu0
      %v2424 = vadd.f32 0.0, %v2423
      %v2425 = vpop.f32.mrf.mxu0
      %v2426 = vpop.f32.mrf.mxu0
      %v2427 = vadd.f32 0.0, %v2426
      %v2428 = vpop.f32.mrf.mxu0
      %2429 = vmatprep.mubr.bf16.mxu0 0
      %2430 = vmatmul.mubr.bf16.gmra.mxu0 %v2138
      %v2431 = vpop.f32.mrf.mxu0
      %v2432 = vadd.f32 0.0, %v2431
      %v2433 = vpop.f32.mrf.mxu0
      %v2434 = vpop.f32.mrf.mxu0
      %v2435 = vadd.f32 0.0, %v2434
      %v2436 = vpop.f32.mrf.mxu0
      %2437 = vdwg.mxu0
      %2438 = vmatprep.subr.bf16.mxu0 0
      %2439 = vmatpush1.bf16.msra.mxu0 %v637
      %2440 = vmatprep.subr.bf16.mxu0 0
      %2441 = vmatpush1.bf16.msra.mxu0 %v636
      %2442 = vmatprep.subr.bf16.mxu0 0
      %2443 = vmatpush1.bf16.msra.mxu0 %v635
      %2444 = vmatprep.subr.bf16.mxu0 0
      %2445 = vmatpush1.bf16.msra.mxu0 %v634
      %2446 = vmatprep.subr.bf16.mxu0 0
      %2447 = vmatpush1.bf16.msra.mxu0 %v633
      %2448 = vmatprep.subr.bf16.mxu0 0
      %2449 = vmatpush1.bf16.msra.mxu0 %v632
      %2450 = vmatprep.subr.bf16.mxu0 0
      %2451 = vmatpush1.bf16.msra.mxu0 %v631
      %2452 = vmatprep.subr.bf16.mxu0 0
      %2453 = vmatpush1.bf16.msra.mxu0 %v630
      %2454 = vmatprep.subr.bf16.mxu0 0
      %2455 = vmatpush2.bf16.msra.mxu0 0
      %2456 = vmatprep.subr.bf16.mxu0 0
      %2457 = vmatpush2.bf16.msra.mxu0 0
      %2458 = vmatprep.subr.bf16.mxu0 0
      %2459 = vmatpush2.bf16.msra.mxu0 0
      %2460 = vmatprep.subr.bf16.mxu0 0
      %2461 = vmatpush2.bf16.msra.mxu0 0
      %2462 = vmatprep.subr.bf16.mxu0 0
      %2463 = vmatpush2.bf16.msra.mxu0 0
      %2464 = vmatprep.subr.bf16.mxu0 0
      %2465 = vmatpush2.bf16.msra.mxu0 0
      %2466 = vmatprep.subr.bf16.mxu0 0
      %2467 = vmatpush2.bf16.msra.mxu0 0
      %2468 = vmatprep.subr.bf16.mxu0 0
      %2469 = vmatpush2.bf16.msra.mxu0 0
      %2470 = vmatprep.mubr.bf16.mxu0 0
      %2471 = vmatmul.mubr.bf16.gmra.mxu0 %v2139
      %v2472 = vpop.f32.mrf.mxu0
      %v2473 = vadd.f32 0.0, %v2472
      %v2474 = vpop.f32.mrf.mxu0
      %v2475 = vpop.f32.mrf.mxu0
      %v2476 = vadd.f32 0.0, %v2475
      %v2477 = vpop.f32.mrf.mxu0
      %2478 = vmatprep.mubr.bf16.mxu0 0
      %2479 = vmatmul.mubr.bf16.gmra.mxu0 %v2140
      %v2480 = vpop.f32.mrf.mxu0
      %v2481 = vadd.f32 0.0, %v2480
      %v2482 = vpop.f32.mrf.mxu0
      %v2483 = vpop.f32.mrf.mxu0
      %v2484 = vadd.f32 0.0, %v2483
      %v2485 = vpop.f32.mrf.mxu0
      %2486 = vmatprep.mubr.bf16.mxu0 0
      %2487 = vmatmul.mubr.bf16.gmra.mxu0 %v2141
      %v2488 = vpop.f32.mrf.mxu0
      %v2489 = vadd.f32 0.0, %v2488
      %v2490 = vpop.f32.mrf.mxu0
      %v2491 = vpop.f32.mrf.mxu0
      %v2492 = vadd.f32 0.0, %v2491
      %v2493 = vpop.f32.mrf.mxu0
      %2494 = vmatprep.mubr.bf16.mxu0 0
      %2495 = vmatmul.mubr.bf16.gmra.mxu0 %v2142
      %v2496 = vpop.f32.mrf.mxu0
      %v2497 = vadd.f32 0.0, %v2496
      %v2498 = vpop.f32.mrf.mxu0
      %v2499 = vpop.f32.mrf.mxu0
      %v2500 = vadd.f32 0.0, %v2499
      %v2501 = vpop.f32.mrf.mxu0
      %2502 = vmatprep.mubr.bf16.mxu0 0
      %2503 = vmatmul.mubr.bf16.gmra.mxu0 %v2143
      %v2504 = vpop.f32.mrf.mxu0
      %v2505 = vadd.f32 0.0, %v2504
      %v2506 = vpop.f32.mrf.mxu0
      %v2507 = vpop.f32.mrf.mxu0
      %v2508 = vadd.f32 0.0, %v2507
      %v2509 = vpop.f32.mrf.mxu0
      %2510 = vmatprep.mubr.bf16.mxu0 0
      %2511 = vmatmul.mubr.bf16.gmra.mxu0 %v2144
      %v2512 = vpop.f32.mrf.mxu0
      %v2513 = vadd.f32 0.0, %v2512
      %v2514 = vpop.f32.mrf.mxu0
      %v2515 = vpop.f32.mrf.mxu0
      %v2516 = vadd.f32 0.0, %v2515
      %v2517 = vpop.f32.mrf.mxu0
      %2518 = vmatprep.mubr.bf16.mxu0 0
      %2519 = vmatmul.mubr.bf16.gmra.mxu0 %v2145
      %v2520 = vpop.f32.mrf.mxu0
      %v2521 = vadd.f32 0.0, %v2520
      %v2522 = vpop.f32.mrf.mxu0
      %v2523 = vpop.f32.mrf.mxu0
      %v2524 = vadd.f32 0.0, %v2523
      %v2525 = vpop.f32.mrf.mxu0
      %2526 = vmatprep.mubr.bf16.mxu0 0
      %2527 = vmatmul.mubr.bf16.gmra.mxu0 %v2146
      %v2528 = vpop.f32.mrf.mxu0
      %v2529 = vadd.f32 0.0, %v2528
      %v2530 = vpop.f32.mrf.mxu0
      %v2531 = vpop.f32.mrf.mxu0
      %v2532 = vadd.f32 0.0, %v2531
      %v2533 = vpop.f32.mrf.mxu0
      %2534 = vdwg.mxu0
      %2535 = vst.msk [vmem:[%s284] sm:$0xff] %vm702, %v2182
      %2536 = vst.msk [vmem:[%s284 + $0x8] sm:$0xff] %vm702, %v2185
      %2537 = vst.msk [vmem:[%s284 + $0x10] sm:$0xff] %vm702, %v2190
      %2538 = vst.msk [vmem:[%s284 + $0x18] sm:$0xff] %vm702, %v2193
      %2539 = vst.msk [vmem:[%s284 + $0x20] sm:$0xff] %vm702, %v2198
      %2540 = vst.msk [vmem:[%s284 + $0x28] sm:$0xff] %vm702, %v2201
      %2541 = vst.msk [vmem:[%s284 + $0x30] sm:$0xff] %vm702, %v2206
      %2542 = vst.msk [vmem:[%s284 + $0x38] sm:$0xff] %vm702, %v2209
      %2543 = vst.msk [vmem:[%s284 + $0x40] sm:$0xff] %vm702, %v2214
      %2544 = vst.msk [vmem:[%s284 + $0x48] sm:$0xff] %vm702, %v2217
      %2545 = vst.msk [vmem:[%s284 + $0x50] sm:$0xff] %vm702, %v2222
      %2546 = vst.msk [vmem:[%s284 + $0x58] sm:$0xff] %vm702, %v2225
      %2547 = vst.msk [vmem:[%s284 + $0x60] sm:$0xff] %vm702, %v2230
      %2548 = vst.msk [vmem:[%s284 + $0x68] sm:$0xff] %vm702, %v2233
      %2549 = vst.msk [vmem:[%s284 + $0x70] sm:$0xff] %vm702, %v2238
      %2550 = vst.msk [vmem:[%s284 + $0x78] sm:$0xff] %vm702, %v2241
      %2551 = vst.msk [vmem:[%s284 + $0x80] sm:$0xff] %vm702, %v2279
      %2552 = vst.msk [vmem:[%s284 + $0x88] sm:$0xff] %vm702, %v2282
      %2553 = vst.msk [vmem:[%s284 + $0x90] sm:$0xff] %vm702, %v2287
      %2554 = vst.msk [vmem:[%s284 + $0x98] sm:$0xff] %vm702, %v2290
      %2555 = vst.msk [vmem:[%s284 + $0xa0] sm:$0xff] %vm702, %v2295
      %2556 = vst.msk [vmem:[%s284 + $0xa8] sm:$0xff] %vm702, %v2298
      %2557 = vst.msk [vmem:[%s284 + $0xb0] sm:$0xff] %vm702, %v2303
      %2558 = vst.msk [vmem:[%s284 + $0xb8] sm:$0xff] %vm702, %v2306
      %2559 = vst.msk [vmem:[%s284 + $0xc0] sm:$0xff] %vm702, %v2311
      %2560 = vst.msk [vmem:[%s284 + $0xc8] sm:$0xff] %vm702, %v2314
      %2561 = vst.msk [vmem:[%s284 + $0xd0] sm:$0xff] %vm702, %v2319
      %2562 = vst.msk [vmem:[%s284 + $0xd8] sm:$0xff] %vm702, %v2322
      %2563 = vst.msk [vmem:[%s284 + $0xe0] sm:$0xff] %vm702, %v2327
      %2564 = vst.msk [vmem:[%s284 + $0xe8] sm:$0xff] %vm702, %v2330
      %2565 = vst.msk [vmem:[%s284 + $0xf0] sm:$0xff] %vm702, %v2335
      %2566 = vst.msk [vmem:[%s284 + $0xf8] sm:$0xff] %vm702, %v2338
      %2567 = vst.msk [vmem:[%s284 + $0x100] sm:$0xff] %vm702, %v2376
      %2568 = vst.msk [vmem:[%s284 + $0x108] sm:$0xff] %vm702, %v2379
      %2569 = vst.msk [vmem:[%s284 + $0x110] sm:$0xff] %vm702, %v2384
      %2570 = vst.msk [vmem:[%s284 + $0x118] sm:$0xff] %vm702, %v2387
      %2571 = vst.msk [vmem:[%s284 + $0x120] sm:$0xff] %vm702, %v2392
      %2572 = vst.msk [vmem:[%s284 + $0x128] sm:$0xff] %vm702, %v2395
      %2573 = vst.msk [vmem:[%s284 + $0x130] sm:$0xff] %vm702, %v2400
      %2574 = vst.msk [vmem:[%s284 + $0x138] sm:$0xff] %vm702, %v2403
      %2575 = vst.msk [vmem:[%s284 + $0x140] sm:$0xff] %vm702, %v2408
      %2576 = vst.msk [vmem:[%s284 + $0x148] sm:$0xff] %vm702, %v2411
      %2577 = vst.msk [vmem:[%s284 + $0x150] sm:$0xff] %vm702, %v2416
      %2578 = vst.msk [vmem:[%s284 + $0x158] sm:$0xff] %vm702, %v2419
      %2579 = vst.msk [vmem:[%s284 + $0x160] sm:$0xff] %vm702, %v2424
      %2580 = vst.msk [vmem:[%s284 + $0x168] sm:$0xff] %vm702, %v2427
      %2581 = vst.msk [vmem:[%s284 + $0x170] sm:$0xff] %vm702, %v2432
      %2582 = vst.msk [vmem:[%s284 + $0x178] sm:$0xff] %vm702, %v2435
      %2583 = vst.msk [vmem:[%s284 + $0x180] sm:$0xff] %vm702, %v2473
      %2584 = vst.msk [vmem:[%s284 + $0x188] sm:$0xff] %vm702, %v2476
      %2585 = vst.msk [vmem:[%s284 + $0x190] sm:$0xff] %vm702, %v2481
      %2586 = vst.msk [vmem:[%s284 + $0x198] sm:$0xff] %vm702, %v2484
      %2587 = vst.msk [vmem:[%s284 + $0x1a0] sm:$0xff] %vm702, %v2489
      %2588 = vst.msk [vmem:[%s284 + $0x1a8] sm:$0xff] %vm702, %v2492
      %2589 = vst.msk [vmem:[%s284 + $0x1b0] sm:$0xff] %vm702, %v2497
      %2590 = vst.msk [vmem:[%s284 + $0x1b8] sm:$0xff] %vm702, %v2500
      %2591 = vst.msk [vmem:[%s284 + $0x1c0] sm:$0xff] %vm702, %v2505
      %2592 = vst.msk [vmem:[%s284 + $0x1c8] sm:$0xff] %vm702, %v2508
      %2593 = vst.msk [vmem:[%s284 + $0x1d0] sm:$0xff] %vm702, %v2513
      %2594 = vst.msk [vmem:[%s284 + $0x1d8] sm:$0xff] %vm702, %v2516
      %2595 = vst.msk [vmem:[%s284 + $0x1e0] sm:$0xff] %vm702, %v2521
      %2596 = vst.msk [vmem:[%s284 + $0x1e8] sm:$0xff] %vm702, %v2524
      %2597 = vst.msk [vmem:[%s284 + $0x1f0] sm:$0xff] %vm702, %v2529
      %2598 = vst.msk [vmem:[%s284 + $0x1f8] sm:$0xff] %vm702, %v2532
      %p2599 = scmp.lt.s32.totalorder %s16, 1
      %s2600 = scalar_select %p2599, %s16, 1
      %s2601 = smul.addr %s2600, 64
      %s2602 = smul.addr %s2601, 8
      %s2603 = scalar_lea.vmem %s5, %s2602
      // Predicated region
      $region41: #{tpu_custom_call.1} parent=39 // pred_check
        %p2604 = pneg %p159
      $region42: #{tpu_custom_call.1} parent=39 // pred_check_branch
        %2606 = sbr.rel (%p2604) target = $region44
      $region43: #{tpu_custom_call.1} parent=39 // pred_region
        _
      $region44: #{tpu_custom_call.1} parent=39 // pred_fallthru
        _
    $region40: #{tpu_custom_call.1} parent=5 // pred_fallthru
      _
    %p2607 = scmp.le.s32.totalorder 2, %s11
    // Predicated region
    $region45: #{tpu_custom_call.1} parent=5 // pred_check
      %p2608 = pneg %p2607
    $region46: #{tpu_custom_call.1} parent=5 // pred_check_branch
      %2610 = sbr.rel (%p2608) target = $region48
    $region47: #{tpu_custom_call.1} parent=5 // pred_region
      %s2611 = ssub.s32 %s11, 2
      // Predicated region
      $region49: #{tpu_custom_call.1} parent=47 // pred_check
        %p2612 = pneg %p165
      $region50: #{tpu_custom_call.1} parent=47 // pred_check_branch
        %2614 = sbr.rel (%p2612) target = $region52
      $region51: #{tpu_custom_call.1} parent=47 // pred_region
        %p2615 = scmp.lt.s32.totalorder %s17, 1
        %s2616 = scalar_select %p2615, %s17, 1
        %s2617 = smul.addr %s2616, 64
        %s2618 = smul.addr %s2617, 8
        %s2619 = scalar_lea.vmem %s5, %s2618
      $region52: #{tpu_custom_call.1} parent=47 // pred_fallthru
        _
    $region48: #{tpu_custom_call.1} parent=5 // pred_fallthru
      _
  $region6: #{tpu_custom_call.1} parent=0 // loop_footer
    %s15 = sadd.s32 1, %s11
  $region7: #{tpu_custom_call.1} parent=0 // loop_footer_branch
    %10 = sbr.rel target = $region3
  $region8: #{tpu_custom_call.1} parent=0 // loop_exit
    _

</llo_original>
